<compile_context>
chip_gen: v6e
topology: v6e:2x2x1
jax: 0.10.0
libtpu: 0.0.40
codegen_flags: <defaults>
</compile_context>

<pallas_src>
import functools

import jax
import jax.numpy as jnp
import numpy as np
from jax.experimental import pallas as pl
from jax.experimental.pallas import tpu as pltpu

LN_EPS = 1e-5  # PyTorch nn.LayerNorm default


def _layernorm_f32(v, gamma, beta):
    """CLIP's LayerNorm subclass: compute in float32, cast back to orig dtype."""
    v32 = v.astype(jnp.float32)
    mu = jnp.mean(v32, axis=-1, keepdims=True)
    var = jnp.mean(jnp.square(v32 - mu), axis=-1, keepdims=True)
    normed = (v32 - mu) * jax.lax.rsqrt(var + LN_EPS)
    return (normed * gamma.astype(jnp.float32)
            + beta.astype(jnp.float32)).astype(v.dtype)


def residual_stack_kernel(n_head, compute_dtype,
                          x_ref,
                          ln1_g_ref, ln1_b_ref,
                          w_qkv_ref, b_qkv_ref,
                          w_out_ref, b_out_ref,
                          ln2_g_ref, ln2_b_ref,
                          w_fc_ref, b_fc_ref,
                          w_proj_ref, b_proj_ref,
                          o_ref):
    """One grid step = one residual block applied to one batch element.

    grid = (batch, layer); the output block (same block index for every layer)
    carries the activations in VMEM across the whole layer sweep.
    """
    layer = pl.program_id(1)

    # Layer 0: seed the resident activation block from the input.
    @pl.when(layer == 0)
    def _():
        o_ref[...] = x_ref[...]

    x = o_ref[...]                               # (L, D), resident across layers
    L, D = x.shape
    hd = D // n_head
    scale = 1.0 / float(hd) ** 0.5

    # ---------------- attention branch: x + out_proj(attn(ln1(x))) ----------
    h = _layernorm_f32(x, ln1_g_ref[...], ln1_b_ref[...]).astype(compute_dtype)

    # qkv = h @ W_in (pre-transposed to (D, 3D)) + b_in     -> (L, 3D) f32
    qkv = jnp.dot(h, w_qkv_ref[...],
                  preferred_element_type=jnp.float32) + b_qkv_ref[...]
    q = (qkv[:, 0 * D:1 * D] * scale).reshape(L, n_head, hd)  # PyTorch: scale q
    k = qkv[:, 1 * D:2 * D].reshape(L, n_head, hd)
    v = qkv[:, 2 * D:3 * D].reshape(L, n_head, hd)

    # per-head scaled dot-product attention (attn_mask is None)
    s = jnp.einsum('lhd,mhd->hlm',
                   q.astype(compute_dtype), k.astype(compute_dtype),
                   preferred_element_type=jnp.float32)        # (H, L, L) f32
    s = s - jnp.max(s, axis=-1, keepdims=True)
    p = jnp.exp(s)
    denom = jnp.sum(p, axis=-1)                               # (H, L) f32
    ctx = jnp.einsum('hlm,mhd->hld',
                     p.astype(compute_dtype), v.astype(compute_dtype),
                     preferred_element_type=jnp.float32)      # (H, L, hd) f32
    # normalize the small context tensor instead of dividing the L x L scores
    ctx = ctx * (1.0 / denom)[:, :, None]
    ctx = jnp.swapaxes(ctx, 0, 1).reshape(L, D)               # (L, D)

    attn_out = jnp.dot(ctx.astype(compute_dtype), w_out_ref[...],
                       preferred_element_type=jnp.float32) + b_out_ref[...]
    x = (x.astype(jnp.float32) + attn_out).astype(o_ref.dtype)

    # ---------------- MLP branch: x + c_proj(QuickGELU(c_fc(ln2(x)))) --------
    h2 = _layernorm_f32(x, ln2_g_ref[...], ln2_b_ref[...]).astype(compute_dtype)
    fc = jnp.dot(h2, w_fc_ref[...],
                 preferred_element_type=jnp.float32) + b_fc_ref[...]
    # QuickGELU: x * sigmoid(1.702 * x)  (the reference QuickGELU.forward is
    # missing its `return`; the intended activation is implemented here)
    act = fc * jax.nn.sigmoid(1.702 * fc)
    mlp_out = jnp.dot(act.astype(compute_dtype), w_proj_ref[...],
                      preferred_element_type=jnp.float32) + b_proj_ref[...]

    o_ref[...] = (x.astype(jnp.float32) + mlp_out).astype(o_ref.dtype)


def transformer_pallas(x, stacked_params, n_head, *, compute_dtype=None,
                       vmem_limit_bytes=None):
    """x: (L, N, D), PyTorch nn.MultiheadAttention (batch_first=False) layout."""
    L, N, D = x.shape
    (ln1_g, ln1_b, w_qkv, b_qkv, w_out, b_out,
     ln2_g, ln2_b, w_fc, b_fc, w_proj, b_proj) = stacked_params
    num_layers = w_qkv.shape[0]

    cdt = jnp.dtype(compute_dtype) if compute_dtype is not None else x.dtype
    # Cast matmul weights (MXU inputs) to the compute dtype; LN/bias stay f32.
    w_qkv, w_out, w_fc, w_proj = (w.astype(cdt)
                                  for w in (w_qkv, w_out, w_fc, w_proj))

    # (L, N, D) -> (N, L, D): each grid step gets a lane/sublane-dense (L, D)
    # token slab (wrapper-side transpose is layout plumbing, not compute).
    xb = jnp.transpose(x, (1, 0, 2))

    def act_map(b, l):
        return (b, 0, 0)

    def w_map(b, l):
        return (l, 0, 0)

    def wspec(arr):
        return pl.BlockSpec((None,) + arr.shape[1:], w_map)

    in_specs = [pl.BlockSpec((None, L, D), act_map)] + [
        wspec(a) for a in (ln1_g, ln1_b, w_qkv, b_qkv, w_out, b_out,
                           ln2_g, ln2_b, w_fc, b_fc, w_proj, b_proj)]
    out_spec = pl.BlockSpec((None, L, D), act_map)

    if vmem_limit_bytes is None:
        # Rough per-step working set: double-buffered weights + f32 activations.
        w_bytes = 2 * (12 * D * D + 10 * D) * jnp.dtype(cdt).itemsize
        act_bytes = 4 * (3 * L * D            # x / out / ln copies
                         + 3 * L * D          # qkv
                         + n_head * L * L     # scores
                         + 2 * 4 * L * D)     # fc + act
        vmem_limit_bytes = int(min(max(int(1.5 * (w_bytes + act_bytes)),
                                       32 * 1024 * 1024),
                                   64 * 1024 * 1024))

    out = pl.pallas_call(
        functools.partial(residual_stack_kernel, n_head, cdt),
        out_shape=jax.ShapeDtypeStruct((N, L, D), x.dtype),
        grid=(N, num_layers),
        in_specs=in_specs,
        out_specs=out_spec,
        compiler_params=pltpu.CompilerParams(
            dimension_semantics=("parallel", "arbitrary"),
            vmem_limit_bytes=vmem_limit_bytes),
    )(xb, ln1_g, ln1_b, w_qkv, b_qkv, w_out, b_out,
      ln2_g, ln2_b, w_fc, b_fc, w_proj, b_proj)

    return jnp.transpose(out, (1, 0, 2))     # back to (L, N, D)


# ---------------------- parameter construction (deterministic) --------------
def init_block_params(key, d_model):
    """Per-layer params in PyTorch layout (nn.Linear weight = (out, in))."""
    ks = jax.random.split(key, 10)
    s = 0.02
    return dict(
        ln1_g=1.0 + s * jax.random.normal(ks[0], (d_model,), jnp.float32),
        ln1_b=s * jax.random.normal(ks[1], (d_model,), jnp.float32),
        w_qkv=s * jax.random.normal(ks[2], (3 * d_model, d_model), jnp.float32),
        b_qkv=s * jax.random.normal(ks[3], (3 * d_model,), jnp.float32),
        w_out=s * jax.random.normal(ks[4], (d_model, d_model), jnp.float32),
        b_out=s * jax.random.normal(ks[5], (d_model,), jnp.float32),
        ln2_g=1.0 + s * jax.random.normal(ks[6], (d_model,), jnp.float32),
        ln2_b=s * jax.random.normal(ks[7], (d_model,), jnp.float32),
        w_fc=s * jax.random.normal(ks[8], (4 * d_model, d_model), jnp.float32),
        b_fc=s * jax.random.normal(ks[9], (4 * d_model,), jnp.float32),
        w_proj=s * jax.random.normal(jax.random.fold_in(key, 99),
                                     (d_model, 4 * d_model), jnp.float32),
        b_proj=s * jax.random.normal(jax.random.fold_in(key, 100),
                                     (d_model,), jnp.float32),
    )


def stack_layer_params(layer_params):
    """Stack per-layer params on a leading layer axis and pre-transpose the
    Linear weights so every in-kernel projection is a plain A @ W."""
    def stk(name):
        return jnp.stack([p[name] for p in layer_params], axis=0)

    def row(a):                                # (layers, K) -> (layers, 1, K)
        return a[:, None, :]

    return (
        row(stk("ln1_g")), row(stk("ln1_b")),
        jnp.swapaxes(stk("w_qkv"), 1, 2), row(stk("b_qkv")),   # (layers, D, 3D)
        jnp.swapaxes(stk("w_out"), 1, 2), row(stk("b_out")),   # (layers, D, D)
        row(stk("ln2_g")), row(stk("ln2_b")),
        jnp.swapaxes(stk("w_fc"), 1, 2), row(stk("b_fc")),     # (layers, D, 4D)
        jnp.swapaxes(stk("w_proj"), 1, 2), row(stk("b_proj")), # (layers, 4D, D)
    )


# ---------------------- pure-JAX reference (silent correctness check) -------
def _ref_block(x, p, n_head):
    L, N, D = x.shape
    hd = D // n_head

    def ln(v, g, b):
        mu = v.mean(-1, keepdims=True)
        var = ((v - mu) ** 2).mean(-1, keepdims=True)
        return (v - mu) / jnp.sqrt(var + LN_EPS) * g + b

    h = ln(x, p["ln1_g"], p["ln1_b"])
    qkv = jnp.einsum('lnd,ed->lne', h, p["w_qkv"]) + p["b_qkv"]
    q = qkv[..., :D] / jnp.sqrt(hd)
    k = qkv[..., D:2 * D]
    v = qkv[..., 2 * D:]
    q = q.reshape(L, N, n_head, hd)
    k = k.reshape(L, N, n_head, hd)
    v = v.reshape(L, N, n_head, hd)
    s = jnp.einsum('lnhd,mnhd->nhlm', q, k)
    pr = jax.nn.softmax(s, axis=-1)
    ctx = jnp.einsum('nhlm,mnhd->lnhd', pr, v).reshape(L, N, D)
    attn_out = jnp.einsum('lnd,ed->lne', ctx, p["w_out"]) + p["b_out"]
    x = x + attn_out
    h2 = ln(x, p["ln2_g"], p["ln2_b"])
    fc = jnp.einsum('lnd,fd->lnf', h2, p["w_fc"]) + p["b_fc"]
    act = fc * jax.nn.sigmoid(1.702 * fc)
    return x + jnp.einsum('lnf,df->lnd', act, p["w_proj"]) + p["b_proj"]


if __name__ == "__main__":
    # Small, forward-consistent shapes: width=32, layers=2, heads=4, seq=8, batch=2
    width, layers, heads = 32, 2, 4
    seq_len, batch = 8, 2

    root = jax.random.PRNGKey(0)
    x_key, p_key = jax.random.split(root)
    x = jax.random.normal(x_key, (seq_len, batch, width), jnp.float32)

    per_layer = [init_block_params(jax.random.fold_in(p_key, i), width)
                 for i in range(layers)]
    stacked = stack_layer_params(per_layer)

    fwd = jax.jit(functools.partial(transformer_pallas, n_head=heads))
    out = jax.block_until_ready(fwd(x, stacked))

    # silent correctness check against pure-JAX reference
    ref = x
    for p in per_layer:
        ref = _ref_block(ref, p, heads)
    np.testing.assert_allclose(np.asarray(out), np.asarray(ref),
                               rtol=1e-4, atol=1e-4)

    print("KERNEL_OK")
</pallas_src>

<mosaic_0001>
module attributes {stable_mosaic.version = 11 : i64} {
  func.func @residual_stack_kernel(%arg0: i32, %arg1: i32, %arg2: memref<1x8x32xf32, #tpu.memory_space<vmem>>, %arg3: memref<1x1x32xf32, #tpu.memory_space<vmem>>, %arg4: memref<1x1x32xf32, #tpu.memory_space<vmem>>, %arg5: memref<1x32x96xf32, #tpu.memory_space<vmem>>, %arg6: memref<1x1x96xf32, #tpu.memory_space<vmem>>, %arg7: memref<1x32x32xf32, #tpu.memory_space<vmem>>, %arg8: memref<1x1x32xf32, #tpu.memory_space<vmem>>, %arg9: memref<1x1x32xf32, #tpu.memory_space<vmem>>, %arg10: memref<1x1x32xf32, #tpu.memory_space<vmem>>, %arg11: memref<1x32x128xf32, #tpu.memory_space<vmem>>, %arg12: memref<1x1x128xf32, #tpu.memory_space<vmem>>, %arg13: memref<1x128x32xf32, #tpu.memory_space<vmem>>, %arg14: memref<1x1x32xf32, #tpu.memory_space<vmem>>, %arg15: memref<1x8x32xf32, #tpu.memory_space<vmem>>) attributes {dimension_semantics = [#tpu.dimension_semantics<parallel>, #tpu.dimension_semantics<arbitrary>], iteration_bounds = array<i64: 2, 2>, scalar_prefetch = 0 : i64, scratch_operands = 0 : i64, tpu.core_type = #tpu.core_type<tc>, window_params = [{transform_indices = @transform_0, window_bounds = array<i64: 1, 8, 32>}, {transform_indices = @transform_1, window_bounds = array<i64: 1, 1, 32>}, {transform_indices = @transform_2, window_bounds = array<i64: 1, 1, 32>}, {transform_indices = @transform_3, window_bounds = array<i64: 1, 32, 96>}, {transform_indices = @transform_4, window_bounds = array<i64: 1, 1, 96>}, {transform_indices = @transform_5, window_bounds = array<i64: 1, 32, 32>}, {transform_indices = @transform_6, window_bounds = array<i64: 1, 1, 32>}, {transform_indices = @transform_7, window_bounds = array<i64: 1, 1, 32>}, {transform_indices = @transform_8, window_bounds = array<i64: 1, 1, 32>}, {transform_indices = @transform_9, window_bounds = array<i64: 1, 32, 128>}, {transform_indices = @transform_10, window_bounds = array<i64: 1, 1, 128>}, {transform_indices = @transform_11, window_bounds = array<i64: 1, 128, 32>}, {transform_indices = @transform_12, window_bounds = array<i64: 1, 1, 32>}, {transform_indices = @transform_13, window_bounds = array<i64: 1, 8, 32>}]} {
    %c0_i32 = arith.constant 0 : i32
    %0 = arith.cmpi eq, %arg1, %c0_i32 : i32
    %1 = arith.extui %0 : i1 to i32
    %c0_i32_0 = arith.constant 0 : i32
    %2 = arith.cmpi ne, %1, %c0_i32_0 : i32
    scf.if %2 {
      %c0_63 = arith.constant 0 : index
      %c0_64 = arith.constant 0 : index
      %c0_65 = arith.constant 0 : index
      %121 = vector.load %arg2[%c0_63, %c0_64, %c0_65] : memref<1x8x32xf32, #tpu.memory_space<vmem>>, vector<1x8x32xf32>
      %122 = vector.shape_cast %121 : vector<1x8x32xf32> to vector<8x32xf32>
      %c0_66 = arith.constant 0 : index
      %c0_67 = arith.constant 0 : index
      %c0_68 = arith.constant 0 : index
      %123 = vector.load %arg15[%c0_66, %c0_67, %c0_68] : memref<1x8x32xf32, #tpu.memory_space<vmem>>, vector<1x8x32xf32>
      %124 = vector.shape_cast %123 : vector<1x8x32xf32> to vector<8x32xf32>
      %125 = vector.shape_cast %122 : vector<8x32xf32> to vector<1x8x32xf32>
      tpu.vector_store %arg15[%c0_66, %c0_67, %c0_68], %125 {strides = array<i32>} : memref<1x8x32xf32, #tpu.memory_space<vmem>>, vector<1x8x32xf32>,
    } else {
    }
    %c0 = arith.constant 0 : index
    %c0_1 = arith.constant 0 : index
    %c0_2 = arith.constant 0 : index
    %3 = vector.load %arg15[%c0, %c0_1, %c0_2] : memref<1x8x32xf32, #tpu.memory_space<vmem>>, vector<1x8x32xf32>
    %4 = vector.shape_cast %3 : vector<1x8x32xf32> to vector<8x32xf32>
    %c0_3 = arith.constant 0 : index
    %c0_4 = arith.constant 0 : index
    %c0_5 = arith.constant 0 : index
    %5 = vector.load %arg3[%c0_3, %c0_4, %c0_5] : memref<1x1x32xf32, #tpu.memory_space<vmem>>, vector<1x1x32xf32>
    %6 = vector.shape_cast %5 : vector<1x1x32xf32> to vector<1x32xf32>
    %c0_6 = arith.constant 0 : index
    %c0_7 = arith.constant 0 : index
    %c0_8 = arith.constant 0 : index
    %7 = vector.load %arg4[%c0_6, %c0_7, %c0_8] : memref<1x1x32xf32, #tpu.memory_space<vmem>>, vector<1x1x32xf32>
    %8 = vector.shape_cast %7 : vector<1x1x32xf32> to vector<1x32xf32>
    %cst = arith.constant dense<0.000000e+00> : vector<8xf32>
    %9 = vector.multi_reduction <add>, %4, %cst [1] : vector<8x32xf32> to vector<8xf32>
    %10 = vector.shape_cast %9 : vector<8xf32> to vector<8x1xf32>
    %cst_9 = arith.constant 3.200000e+01 : f32
    %11 = vector.broadcast %cst_9 : f32 to vector<8x1xf32>
    %12 = arith.divf %10, %11 : vector<8x1xf32>
    %13 = vector.broadcast %12 : vector<8x1xf32> to vector<8x32xf32>
    %14 = arith.subf %4, %13 : vector<8x32xf32>
    %15 = arith.mulf %14, %14 : vector<8x32xf32>
    %cst_10 = arith.constant dense<0.000000e+00> : vector<8xf32>
    %16 = vector.multi_reduction <add>, %15, %cst_10 [1] : vector<8x32xf32> to vector<8xf32>
    %17 = vector.shape_cast %16 : vector<8xf32> to vector<8x1xf32>
    %cst_11 = arith.constant 3.200000e+01 : f32
    %18 = vector.broadcast %cst_11 : f32 to vector<8x1xf32>
    %19 = arith.divf %17, %18 : vector<8x1xf32>
    %20 = vector.broadcast %12 : vector<8x1xf32> to vector<8x32xf32>
    %21 = arith.subf %4, %20 : vector<8x32xf32>
    %cst_12 = arith.constant 9.99999974E-6 : f32
    %22 = vector.broadcast %cst_12 : f32 to vector<8x1xf32>
    %23 = arith.addf %19, %22 : vector<8x1xf32>
    %24 = math.rsqrt %23 : vector<8x1xf32>
    %25 = vector.broadcast %24 : vector<8x1xf32> to vector<8x32xf32>
    %26 = arith.mulf %21, %25 : vector<8x32xf32>
    %27 = vector.broadcast %6 : vector<1x32xf32> to vector<8x32xf32>
    %28 = arith.mulf %26, %27 : vector<8x32xf32>
    %29 = vector.broadcast %8 : vector<1x32xf32> to vector<8x32xf32>
    %30 = arith.addf %28, %29 : vector<8x32xf32>
    %c0_13 = arith.constant 0 : index
    %c0_14 = arith.constant 0 : index
    %c0_15 = arith.constant 0 : index
    %31 = vector.load %arg5[%c0_13, %c0_14, %c0_15] : memref<1x32x96xf32, #tpu.memory_space<vmem>>, vector<1x32x96xf32>
    %32 = vector.shape_cast %31 : vector<1x32x96xf32> to vector<32x96xf32>
    %cst_16 = arith.constant dense<0.000000e+00> : vector<8x96xf32>
    %33 = tpu.matmul %30, %32, %cst_16 {dimension_numbers = #tpu.dot_dimension_numbers<[1], [0], [0], [1], [0, 0, 1, 1], [], []>} : vector<8x32xf32>, vector<32x96xf32>, vector<8x96xf32> -> vector<8x96xf32>
    %c0_17 = arith.constant 0 : index
    %c0_18 = arith.constant 0 : index
    %c0_19 = arith.constant 0 : index
    %34 = vector.load %arg6[%c0_17, %c0_18, %c0_19] : memref<1x1x96xf32, #tpu.memory_space<vmem>>, vector<1x1x96xf32>
    %35 = vector.shape_cast %34 : vector<1x1x96xf32> to vector<1x96xf32>
    %36 = vector.broadcast %35 : vector<1x96xf32> to vector<8x96xf32>
    %37 = arith.addf %33, %36 : vector<8x96xf32>
    %38 = vector.extract_strided_slice %37 {offsets = [0, 0], sizes = [8, 32], strides = [1, 1]} : vector<8x96xf32> to vector<8x32xf32>
    %cst_20 = arith.constant 0.353553385 : f32
    %39 = vector.broadcast %cst_20 : f32 to vector<8x32xf32>
    %40 = arith.mulf %38, %39 : vector<8x32xf32>
    %41 = vector.shape_cast %40 : vector<8x32xf32> to vector<8x4x8xf32>
    %42 = vector.extract_strided_slice %37 {offsets = [0, 32], sizes = [8, 32], strides = [1, 1]} : vector<8x96xf32> to vector<8x32xf32>
    %43 = vector.shape_cast %42 : vector<8x32xf32> to vector<8x4x8xf32>
    %44 = vector.extract_strided_slice %37 {offsets = [0, 64], sizes = [8, 32], strides = [1, 1]} : vector<8x96xf32> to vector<8x32xf32>
    %45 = vector.shape_cast %44 : vector<8x32xf32> to vector<8x4x8xf32>
    "tpu.trace_start"() <{level = 10 : i32, message = "lhd,mhd->hlm"}> : () -> ()
    %cst_21 = arith.constant dense<0.000000e+00> : vector<4x8x8xf32>
    %46 = tpu.matmul %41, %43, %cst_21 {dimension_numbers = #tpu.dot_dimension_numbers<[2], [2], [0], [0], [0, 1, 0, 0, 1, 0], [1], [1]>} : vector<8x4x8xf32>, vector<8x4x8xf32>, vector<4x8x8xf32> -> vector<4x8x8xf32>
    "tpu.trace_stop"() : () -> ()
    %cst_22 = arith.constant dense<0xFF800000> : vector<4x8xf32>
    %47 = vector.multi_reduction <maximumf>, %46, %cst_22 [2] : vector<4x8x8xf32> to vector<4x8xf32>
    %48 = vector.shape_cast %47 : vector<4x8xf32> to vector<4x8x1xf32>
    %49 = vector.broadcast %48 : vector<4x8x1xf32> to vector<4x8x8xf32>
    %50 = arith.subf %46, %49 : vector<4x8x8xf32>
    %51 = math.exp %50 : vector<4x8x8xf32>
    %cst_23 = arith.constant dense<0.000000e+00> : vector<4x8xf32>
    %52 = vector.multi_reduction <add>, %51, %cst_23 [2] : vector<4x8x8xf32> to vector<4x8xf32>
    "tpu.trace_start"() <{level = 10 : i32, message = "hlm,mhd->hld"}> : () -> ()
    %cst_24 = arith.constant dense<0.000000e+00> : vector<4x8x8xf32>
    %53 = tpu.matmul %51, %45, %cst_24 {dimension_numbers = #tpu.dot_dimension_numbers<[2], [0], [1], [2], [0, 0, 0, 1, 1, 2], [0], [1]>} : vector<4x8x8xf32>, vector<8x4x8xf32>, vector<4x8x8xf32> -> vector<4x8x8xf32>
    "tpu.trace_stop"() : () -> ()
    %cst_25 = arith.constant 1.000000e+00 : f32
    %54 = vector.broadcast %cst_25 : f32 to vector<4x8xf32>
    %55 = arith.divf %54, %52 : vector<4x8xf32>
    %56 = vector.shape_cast %55 : vector<4x8xf32> to vector<4x8x1xf32>
    %57 = vector.broadcast %56 : vector<4x8x1xf32> to vector<4x8x8xf32>
    %58 = arith.mulf %53, %57 : vector<4x8x8xf32>
    %59 = tpu.transpose %58, [1, 0, 2] : vector<4x8x8xf32> -> vector<8x4x8xf32>
    %60 = vector.shape_cast %59 : vector<8x4x8xf32> to vector<8x32xf32>
    %c0_26 = arith.constant 0 : index
    %c0_27 = arith.constant 0 : index
    %c0_28 = arith.constant 0 : index
    %61 = vector.load %arg7[%c0_26, %c0_27, %c0_28] : memref<1x32x32xf32, #tpu.memory_space<vmem>>, vector<1x32x32xf32>
    %62 = vector.shape_cast %61 : vector<1x32x32xf32> to vector<32x32xf32>
    %cst_29 = arith.constant dense<0.000000e+00> : vector<8x32xf32>
    %63 = tpu.matmul %60, %62, %cst_29 {dimension_numbers = #tpu.dot_dimension_numbers<[1], [0], [0], [1], [0, 0, 1, 1], [], []>} : vector<8x32xf32>, vector<32x32xf32>, vector<8x32xf32> -> vector<8x32xf32>
    %c0_30 = arith.constant 0 : index
    %c0_31 = arith.constant 0 : index
    %c0_32 = arith.constant 0 : index
    %64 = vector.load %arg8[%c0_30, %c0_31, %c0_32] : memref<1x1x32xf32, #tpu.memory_space<vmem>>, vector<1x1x32xf32>
    %65 = vector.shape_cast %64 : vector<1x1x32xf32> to vector<1x32xf32>
    %66 = vector.broadcast %65 : vector<1x32xf32> to vector<8x32xf32>
    %67 = arith.addf %63, %66 : vector<8x32xf32>
    %68 = arith.addf %4, %67 : vector<8x32xf32>
    %c0_33 = arith.constant 0 : index
    %c0_34 = arith.constant 0 : index
    %c0_35 = arith.constant 0 : index
    %69 = vector.load %arg9[%c0_33, %c0_34, %c0_35] : memref<1x1x32xf32, #tpu.memory_space<vmem>>, vector<1x1x32xf32>
    %70 = vector.shape_cast %69 : vector<1x1x32xf32> to vector<1x32xf32>
    %c0_36 = arith.constant 0 : index
    %c0_37 = arith.constant 0 : index
    %c0_38 = arith.constant 0 : index
    %71 = vector.load %arg10[%c0_36, %c0_37, %c0_38] : memref<1x1x32xf32, #tpu.memory_space<vmem>>, vector<1x1x32xf32>
    %72 = vector.shape_cast %71 : vector<1x1x32xf32> to vector<1x32xf32>
    %cst_39 = arith.constant dense<0.000000e+00> : vector<8xf32>
    %73 = vector.multi_reduction <add>, %68, %cst_39 [1] : vector<8x32xf32> to vector<8xf32>
    %74 = vector.shape_cast %73 : vector<8xf32> to vector<8x1xf32>
    %cst_40 = arith.constant 3.200000e+01 : f32
    %75 = vector.broadcast %cst_40 : f32 to vector<8x1xf32>
    %76 = arith.divf %74, %75 : vector<8x1xf32>
    %77 = vector.broadcast %76 : vector<8x1xf32> to vector<8x32xf32>
    %78 = arith.subf %68, %77 : vector<8x32xf32>
    %79 = arith.mulf %78, %78 : vector<8x32xf32>
    %cst_41 = arith.constant dense<0.000000e+00> : vector<8xf32>
    %80 = vector.multi_reduction <add>, %79, %cst_41 [1] : vector<8x32xf32> to vector<8xf32>
    %81 = vector.shape_cast %80 : vector<8xf32> to vector<8x1xf32>
    %cst_42 = arith.constant 3.200000e+01 : f32
    %82 = vector.broadcast %cst_42 : f32 to vector<8x1xf32>
    %83 = arith.divf %81, %82 : vector<8x1xf32>
    %84 = vector.broadcast %76 : vector<8x1xf32> to vector<8x32xf32>
    %85 = arith.subf %68, %84 : vector<8x32xf32>
    %cst_43 = arith.constant 9.99999974E-6 : f32
    %86 = vector.broadcast %cst_43 : f32 to vector<8x1xf32>
    %87 = arith.addf %83, %86 : vector<8x1xf32>
    %88 = math.rsqrt %87 : vector<8x1xf32>
    %89 = vector.broadcast %88 : vector<8x1xf32> to vector<8x32xf32>
    %90 = arith.mulf %85, %89 : vector<8x32xf32>
    %91 = vector.broadcast %70 : vector<1x32xf32> to vector<8x32xf32>
    %92 = arith.mulf %90, %91 : vector<8x32xf32>
    %93 = vector.broadcast %72 : vector<1x32xf32> to vector<8x32xf32>
    %94 = arith.addf %92, %93 : vector<8x32xf32>
    %c0_44 = arith.constant 0 : index
    %c0_45 = arith.constant 0 : index
    %c0_46 = arith.constant 0 : index
    %95 = vector.load %arg11[%c0_44, %c0_45, %c0_46] : memref<1x32x128xf32, #tpu.memory_space<vmem>>, vector<1x32x128xf32>
    %96 = vector.shape_cast %95 : vector<1x32x128xf32> to vector<32x128xf32>
    %cst_47 = arith.constant dense<0.000000e+00> : vector<8x128xf32>
    %97 = tpu.matmul %94, %96, %cst_47 {dimension_numbers = #tpu.dot_dimension_numbers<[1], [0], [0], [1], [0, 0, 1, 1], [], []>} : vector<8x32xf32>, vector<32x128xf32>, vector<8x128xf32> -> vector<8x128xf32>
    %c0_48 = arith.constant 0 : index
    %c0_49 = arith.constant 0 : index
    %c0_50 = arith.constant 0 : index
    %98 = vector.load %arg12[%c0_48, %c0_49, %c0_50] : memref<1x1x128xf32, #tpu.memory_space<vmem>>, vector<1x1x128xf32>
    %99 = vector.shape_cast %98 : vector<1x1x128xf32> to vector<1x128xf32>
    %100 = vector.broadcast %99 : vector<1x128xf32> to vector<8x128xf32>
    %101 = arith.addf %97, %100 : vector<8x128xf32>
    %cst_51 = arith.constant 1.702000e+00 : f32
    %102 = vector.broadcast %cst_51 : f32 to vector<8x128xf32>
    %103 = arith.mulf %102, %101 : vector<8x128xf32>
    %104 = arith.negf %103 : vector<8x128xf32>
    %105 = math.exp %104 : vector<8x128xf32>
    %cst_52 = arith.constant 1.000000e+00 : f32
    %106 = vector.broadcast %cst_52 : f32 to vector<8x128xf32>
    %107 = arith.addf %106, %105 : vector<8x128xf32>
    %108 = arith.divf %106, %107 : vector<8x128xf32>
    %109 = arith.mulf %101, %108 : vector<8x128xf32>
    %c0_53 = arith.constant 0 : index
    %c0_54 = arith.constant 0 : index
    %c0_55 = arith.constant 0 : index
    %110 = vector.load %arg13[%c0_53, %c0_54, %c0_55] : memref<1x128x32xf32, #tpu.memory_space<vmem>>, vector<1x128x32xf32>
    %111 = vector.shape_cast %110 : vector<1x128x32xf32> to vector<128x32xf32>
    %cst_56 = arith.constant dense<0.000000e+00> : vector<8x32xf32>
    %112 = tpu.matmul %109, %111, %cst_56 {dimension_numbers = #tpu.dot_dimension_numbers<[1], [0], [0], [1], [0, 0, 1, 1], [], []>} : vector<8x128xf32>, vector<128x32xf32>, vector<8x32xf32> -> vector<8x32xf32>
    %c0_57 = arith.constant 0 : index
    %c0_58 = arith.constant 0 : index
    %c0_59 = arith.constant 0 : index
    %113 = vector.load %arg14[%c0_57, %c0_58, %c0_59] : memref<1x1x32xf32, #tpu.memory_space<vmem>>, vector<1x1x32xf32>
    %114 = vector.shape_cast %113 : vector<1x1x32xf32> to vector<1x32xf32>
    %115 = vector.broadcast %114 : vector<1x32xf32> to vector<8x32xf32>
    %116 = arith.addf %112, %115 : vector<8x32xf32>
    %117 = arith.addf %68, %116 : vector<8x32xf32>
    %c0_60 = arith.constant 0 : index
    %c0_61 = arith.constant 0 : index
    %c0_62 = arith.constant 0 : index
    %118 = vector.load %arg15[%c0_60, %c0_61, %c0_62] : memref<1x8x32xf32, #tpu.memory_space<vmem>>, vector<1x8x32xf32>
    %119 = vector.shape_cast %118 : vector<1x8x32xf32> to vector<8x32xf32>
    %120 = vector.shape_cast %117 : vector<8x32xf32> to vector<1x8x32xf32>
    tpu.vector_store %arg15[%c0_60, %c0_61, %c0_62], %120 {strides = array<i32>} : memref<1x8x32xf32, #tpu.memory_space<vmem>>, vector<1x8x32xf32>,
    return
  }
  func.func @transform_0(%arg0: i32, %arg1: i32) -> (i32, i32, i32) {
    %c0_i32 = arith.constant 0 : i32
    %c0_i32_0 = arith.constant 0 : i32
    %c0_i32_1 = arith.constant 0 : i32
    return %arg0, %c0_i32, %c0_i32_0 : i32, i32, i32
  }
  func.func @transform_1(%arg0: i32, %arg1: i32) -> (i32, i32, i32) {
    %c0_i32 = arith.constant 0 : i32
    %c0_i32_0 = arith.constant 0 : i32
    %c0_i32_1 = arith.constant 0 : i32
    return %arg1, %c0_i32, %c0_i32_0 : i32, i32, i32
  }
  func.func @transform_2(%arg0: i32, %arg1: i32) -> (i32, i32, i32) {
    %c0_i32 = arith.constant 0 : i32
    %c0_i32_0 = arith.constant 0 : i32
    %c0_i32_1 = arith.constant 0 : i32
    return %arg1, %c0_i32, %c0_i32_0 : i32, i32, i32
  }
  func.func @transform_3(%arg0: i32, %arg1: i32) -> (i32, i32, i32) {
    %c0_i32 = arith.constant 0 : i32
    %c0_i32_0 = arith.constant 0 : i32
    %c0_i32_1 = arith.constant 0 : i32
    return %arg1, %c0_i32, %c0_i32_0 : i32, i32, i32
  }
  func.func @transform_4(%arg0: i32, %arg1: i32) -> (i32, i32, i32) {
    %c0_i32 = arith.constant 0 : i32
    %c0_i32_0 = arith.constant 0 : i32
    %c0_i32_1 = arith.constant 0 : i32
    return %arg1, %c0_i32, %c0_i32_0 : i32, i32, i32
  }
  func.func @transform_5(%arg0: i32, %arg1: i32) -> (i32, i32, i32) {
    %c0_i32 = arith.constant 0 : i32
    %c0_i32_0 = arith.constant 0 : i32
    %c0_i32_1 = arith.constant 0 : i32
    return %arg1, %c0_i32, %c0_i32_0 : i32, i32, i32
  }
  func.func @transform_6(%arg0: i32, %arg1: i32) -> (i32, i32, i32) {
    %c0_i32 = arith.constant 0 : i32
    %c0_i32_0 = arith.constant 0 : i32
    %c0_i32_1 = arith.constant 0 : i32
    return %arg1, %c0_i32, %c0_i32_0 : i32, i32, i32
  }
  func.func @transform_7(%arg0: i32, %arg1: i32) -> (i32, i32, i32) {
    %c0_i32 = arith.constant 0 : i32
    %c0_i32_0 = arith.constant 0 : i32
    %c0_i32_1 = arith.constant 0 : i32
    return %arg1, %c0_i32, %c0_i32_0 : i32, i32, i32
  }
  func.func @transform_8(%arg0: i32, %arg1: i32) -> (i32, i32, i32) {
    %c0_i32 = arith.constant 0 : i32
    %c0_i32_0 = arith.constant 0 : i32
    %c0_i32_1 = arith.constant 0 : i32
    return %arg1, %c0_i32, %c0_i32_0 : i32, i32, i32
  }
  func.func @transform_9(%arg0: i32, %arg1: i32) -> (i32, i32, i32) {
    %c0_i32 = arith.constant 0 : i32
    %c0_i32_0 = arith.constant 0 : i32
    %c0_i32_1 = arith.constant 0 : i32
    return %arg1, %c0_i32, %c0_i32_0 : i32, i32, i32
  }
  func.func @transform_10(%arg0: i32, %arg1: i32) -> (i32, i32, i32) {
    %c0_i32 = arith.constant 0 : i32
    %c0_i32_0 = arith.constant 0 : i32
    %c0_i32_1 = arith.constant 0 : i32
    return %arg1, %c0_i32, %c0_i32_0 : i32, i32, i32
  }
  func.func @transform_11(%arg0: i32, %arg1: i32) -> (i32, i32, i32) {
    %c0_i32 = arith.constant 0 : i32
    %c0_i32_0 = arith.constant 0 : i32
    %c0_i32_1 = arith.constant 0 : i32
    return %arg1, %c0_i32, %c0_i32_0 : i32, i32, i32
  }
  func.func @transform_12(%arg0: i32, %arg1: i32) -> (i32, i32, i32) {
    %c0_i32 = arith.constant 0 : i32
    %c0_i32_0 = arith.constant 0 : i32
    %c0_i32_1 = arith.constant 0 : i32
    return %arg1, %c0_i32, %c0_i32_0 : i32, i32, i32
  }
  func.func @transform_13(%arg0: i32, %arg1: i32) -> (i32, i32, i32) {
    %c0_i32 = arith.constant 0 : i32
    %c0_i32_0 = arith.constant 0 : i32
    %c0_i32_1 = arith.constant 0 : i32
    return %arg0, %c0_i32, %c0_i32_0 : i32, i32, i32
  }
}

</mosaic_0001>

<llo_original>
// kernel: transformer_pallas.1
$region0: #{transformer_pallas.1}
  #allocation0 [shape = 'u32[]', space=smem, size = 0x4, offset = 0x4, fixed_abs, tag = 'smem constant byte address 0x4 - core index']
  #allocation1 [shape = 'u32[144,128]{1,0:T(1,128)}', space=vmem, size = 0x12000, scoped, tag = 'internal scratch']
  %s0 = inlined_call_operand.vmem [shape: f32[2,8,32], index: 0, kind: input, shape index: {}]
  %s1 = inlined_call_operand.vmem [shape: f32[2,1,32], index: 1, kind: input, shape index: {}]
  %s2 = inlined_call_operand.vmem [shape: f32[2,1,32], index: 2, kind: input, shape index: {}]
  %s3 = inlined_call_operand.vmem [shape: f32[2,32,96], index: 3, kind: input, shape index: {}]
  %s4 = inlined_call_operand.vmem [shape: f32[2,1,96], index: 4, kind: input, shape index: {}]
  %s5 = inlined_call_operand.vmem [shape: f32[2,32,32], index: 5, kind: input, shape index: {}]
  %s6 = inlined_call_operand.vmem [shape: f32[2,1,32], index: 6, kind: input, shape index: {}]
  %s7 = inlined_call_operand.vmem [shape: f32[2,1,32], index: 7, kind: input, shape index: {}]
  %s8 = inlined_call_operand.vmem [shape: f32[2,1,32], index: 8, kind: input, shape index: {}]
  %s9 = inlined_call_operand.vmem [shape: f32[2,32,128], index: 9, kind: input, shape index: {}]
  %s10 = inlined_call_operand.vmem [shape: f32[2,1,128], index: 10, kind: input, shape index: {}]
  %s11 = inlined_call_operand.vmem [shape: f32[2,128,32], index: 11, kind: input, shape index: {}]
  %s12 = inlined_call_operand.vmem [shape: f32[2,1,32], index: 12, kind: input, shape index: {}]
  %s13 = inlined_call_operand.vmem [shape: f32[2,8,32], index: 13, kind: output, shape index: {}]
  %s14 = sld [smem:[#allocation0]]
  $region89: #{transformer_pallas.1} parent=0
    _
  %s16 = ssub.s32 1, %s14
  %s17 = scalar_select 0, %s16, %s14
  loop: start=0, step=1, limit=6
  $region2: #{transformer_pallas.1} parent=0 // loop_pre_header
    _
  $region3: #{transformer_pallas.1} parent=0 // loop_header
    %s19 = sphi 0, %s23
    %p20 = scmp.ge.s32.totalorder %s19, 6
    %s26 = sphi 0, %s38
    %s27 = sphi 0, %s34
    %s28 = sphi 0, %s26
    %s29 = sphi 0, %s27
    %s30 = sphi 0, %s28
    %s31 = sphi 0, %s29
    %s41 = sphi 0, %s43
    %s44 = sphi 0, %s41
    %s45 = sphi 0, %s44
    %s61 = sphi 0, %s45
    %s67 = sphi 0, %s69
    %s70 = sphi 0, %s67
    %s71 = sphi 0, %s70
    %s87 = sphi 0, %s71
    %s93 = sphi 0, %s95
    %s96 = sphi 0, %s93
    %s97 = sphi 0, %s96
    %s113 = sphi 0, %s97
    %s119 = sphi 0, %s121
    %s122 = sphi 0, %s119
    %s123 = sphi 0, %s122
    %s139 = sphi 0, %s123
    %s145 = sphi 0, %s147
    %s148 = sphi 0, %s145
    %s149 = sphi 0, %s148
    %s165 = sphi 0, %s149
    %s171 = sphi 0, %s173
    %s174 = sphi 0, %s171
    %s175 = sphi 0, %s174
    %s191 = sphi 0, %s175
    %s197 = sphi 0, %s199
    %s200 = sphi 0, %s197
    %s201 = sphi 0, %s200
    %s217 = sphi 0, %s201
    %s223 = sphi 0, %s225
    %s226 = sphi 0, %s223
    %s227 = sphi 0, %s226
    %s243 = sphi 0, %s227
    %s249 = sphi 0, %s251
    %s252 = sphi 0, %s249
    %s253 = sphi 0, %s252
    %s269 = sphi 0, %s253
    %s275 = sphi 0, %s277
    %s278 = sphi 0, %s275
    %s279 = sphi 0, %s278
    %s295 = sphi 0, %s279
    %s301 = sphi 0, %s303
    %s304 = sphi 0, %s301
    %s305 = sphi 0, %s304
    %s321 = sphi 0, %s305
    %s327 = sphi 0, %s329
    %s330 = sphi 0, %s327
    %s331 = sphi 0, %s330
    %s347 = sphi 0, %s331
    %s353 = sphi 0, %s355
    %s356 = sphi 0, %s353
    %s357 = sphi 0, %s356
    %s373 = sphi 0, %s357
    %s379 = sphi 0, %s381
    %s382 = sphi 0, %s379
    %s383 = sphi 0, %s382
    %s399 = sphi 0, %s383
  $region4: #{transformer_pallas.1} parent=0 // loop_header_branch
    %22 = sbr.rel (%p20) target = $region8
  $region5: #{transformer_pallas.1} parent=0 // loop_body
    %s24 = ssub.s32 %s19, 1
    %s25 = ssub.s32 %s19, 2
    %s32 = sadd.s32 1, %s27
    %p33 = scmp.ge.s32.totalorder %s32, 2
    %s34 = scalar_select %p33, 0, %s32
    %s35 = sadd.s32 1, %s26
    %s36 = scalar_select %p33, %s35, %s26
    %p37 = scmp.ge.s32.totalorder %s36, 2
    %s38 = scalar_select %p37, 0, %s36
    %s39 = ssub.s32 %s26, %s38
    %p40 = scmp.eq.s32.totalorder %s39, 0
    %s42 = sadd.s32 %s41, 1
    %s43 = scalar_select %p40, %s41, %s42
    %p46 = pneg %p40
    %p47 = scmp.eq.s32.totalorder %s19, 3
    %p48 = por %p46, %p47
    %p49 = scmp.ne.s32.totalorder %s41, %s44
    %p50 = scmp.eq.s32.totalorder %s19, 0
    %p51 = por %p49, %p50
    %p52 = scmp.ne.s32.totalorder %s41, %s44
    %p53 = scmp.eq.s32.totalorder %s24, 3
    %p54 = por %p52, %p53
    %p55 = scmp.ne.s32.totalorder %s44, %s45
    %p56 = scmp.eq.s32.totalorder %s24, 0
    %p57 = por %p55, %p56
    %p58 = scmp.ne.s32.totalorder %s44, %s45
    %p59 = scmp.eq.s32.totalorder %s25, 3
    %p60 = por %p58, %p59
    %p62 = scmp.ne.s32.totalorder %s45, %s61
    %p63 = scmp.eq.s32.totalorder %s25, 0
    %p64 = por %p62, %p63
    %s65 = ssub.s32 %s27, %s34
    %p66 = scmp.eq.s32.totalorder %s65, 0
    %s68 = sadd.s32 %s67, 1
    %s69 = scalar_select %p66, %s67, %s68
    %p72 = pneg %p66
    %p73 = scmp.eq.s32.totalorder %s19, 3
    %p74 = por %p72, %p73
    %p75 = scmp.ne.s32.totalorder %s67, %s70
    %p76 = scmp.eq.s32.totalorder %s19, 0
    %p77 = por %p75, %p76
    %p78 = scmp.ne.s32.totalorder %s67, %s70
    %p79 = scmp.eq.s32.totalorder %s24, 3
    %p80 = por %p78, %p79
    %p81 = scmp.ne.s32.totalorder %s70, %s71
    %p82 = scmp.eq.s32.totalorder %s24, 0
    %p83 = por %p81, %p82
    %p84 = scmp.ne.s32.totalorder %s70, %s71
    %p85 = scmp.eq.s32.totalorder %s25, 3
    %p86 = por %p84, %p85
    %p88 = scmp.ne.s32.totalorder %s71, %s87
    %p89 = scmp.eq.s32.totalorder %s25, 0
    %p90 = por %p88, %p89
    %s91 = ssub.s32 %s27, %s34
    %p92 = scmp.eq.s32.totalorder %s91, 0
    %s94 = sadd.s32 %s93, 1
    %s95 = scalar_select %p92, %s93, %s94
    %p98 = pneg %p92
    %p99 = scmp.eq.s32.totalorder %s19, 3
    %p100 = por %p98, %p99
    %p101 = scmp.ne.s32.totalorder %s93, %s96
    %p102 = scmp.eq.s32.totalorder %s19, 0
    %p103 = por %p101, %p102
    %p104 = scmp.ne.s32.totalorder %s93, %s96
    %p105 = scmp.eq.s32.totalorder %s24, 3
    %p106 = por %p104, %p105
    %p107 = scmp.ne.s32.totalorder %s96, %s97
    %p108 = scmp.eq.s32.totalorder %s24, 0
    %p109 = por %p107, %p108
    %p110 = scmp.ne.s32.totalorder %s96, %s97
    %p111 = scmp.eq.s32.totalorder %s25, 3
    %p112 = por %p110, %p111
    %p114 = scmp.ne.s32.totalorder %s97, %s113
    %p115 = scmp.eq.s32.totalorder %s25, 0
    %p116 = por %p114, %p115
    %s117 = ssub.s32 %s27, %s34
    %p118 = scmp.eq.s32.totalorder %s117, 0
    %s120 = sadd.s32 %s119, 1
    %s121 = scalar_select %p118, %s119, %s120
    %p124 = pneg %p118
    %p125 = scmp.eq.s32.totalorder %s19, 3
    %p126 = por %p124, %p125
    %p127 = scmp.ne.s32.totalorder %s119, %s122
    %p128 = scmp.eq.s32.totalorder %s19, 0
    %p129 = por %p127, %p128
    %p130 = scmp.ne.s32.totalorder %s119, %s122
    %p131 = scmp.eq.s32.totalorder %s24, 3
    %p132 = por %p130, %p131
    %p133 = scmp.ne.s32.totalorder %s122, %s123
    %p134 = scmp.eq.s32.totalorder %s24, 0
    %p135 = por %p133, %p134
    %p136 = scmp.ne.s32.totalorder %s122, %s123
    %p137 = scmp.eq.s32.totalorder %s25, 3
    %p138 = por %p136, %p137
    %p140 = scmp.ne.s32.totalorder %s123, %s139
    %p141 = scmp.eq.s32.totalorder %s25, 0
    %p142 = por %p140, %p141
    %s143 = ssub.s32 %s27, %s34
    %p144 = scmp.eq.s32.totalorder %s143, 0
    %s146 = sadd.s32 %s145, 1
    %s147 = scalar_select %p144, %s145, %s146
    %p150 = pneg %p144
    %p151 = scmp.eq.s32.totalorder %s19, 3
    %p152 = por %p150, %p151
    %p153 = scmp.ne.s32.totalorder %s145, %s148
    %p154 = scmp.eq.s32.totalorder %s19, 0
    %p155 = por %p153, %p154
    %p156 = scmp.ne.s32.totalorder %s145, %s148
    %p157 = scmp.eq.s32.totalorder %s24, 3
    %p158 = por %p156, %p157
    %p159 = scmp.ne.s32.totalorder %s148, %s149
    %p160 = scmp.eq.s32.totalorder %s24, 0
    %p161 = por %p159, %p160
    %p162 = scmp.ne.s32.totalorder %s148, %s149
    %p163 = scmp.eq.s32.totalorder %s25, 3
    %p164 = por %p162, %p163
    %p166 = scmp.ne.s32.totalorder %s149, %s165
    %p167 = scmp.eq.s32.totalorder %s25, 0
    %p168 = por %p166, %p167
    %s169 = ssub.s32 %s27, %s34
    %p170 = scmp.eq.s32.totalorder %s169, 0
    %s172 = sadd.s32 %s171, 1
    %s173 = scalar_select %p170, %s171, %s172
    %p176 = pneg %p170
    %p177 = scmp.eq.s32.totalorder %s19, 3
    %p178 = por %p176, %p177
    %p179 = scmp.ne.s32.totalorder %s171, %s174
    %p180 = scmp.eq.s32.totalorder %s19, 0
    %p181 = por %p179, %p180
    %p182 = scmp.ne.s32.totalorder %s171, %s174
    %p183 = scmp.eq.s32.totalorder %s24, 3
    %p184 = por %p182, %p183
    %p185 = scmp.ne.s32.totalorder %s174, %s175
    %p186 = scmp.eq.s32.totalorder %s24, 0
    %p187 = por %p185, %p186
    %p188 = scmp.ne.s32.totalorder %s174, %s175
    %p189 = scmp.eq.s32.totalorder %s25, 3
    %p190 = por %p188, %p189
    %p192 = scmp.ne.s32.totalorder %s175, %s191
    %p193 = scmp.eq.s32.totalorder %s25, 0
    %p194 = por %p192, %p193
    %s195 = ssub.s32 %s27, %s34
    %p196 = scmp.eq.s32.totalorder %s195, 0
    %s198 = sadd.s32 %s197, 1
    %s199 = scalar_select %p196, %s197, %s198
    %p202 = pneg %p196
    %p203 = scmp.eq.s32.totalorder %s19, 3
    %p204 = por %p202, %p203
    %p205 = scmp.ne.s32.totalorder %s197, %s200
    %p206 = scmp.eq.s32.totalorder %s19, 0
    %p207 = por %p205, %p206
    %p208 = scmp.ne.s32.totalorder %s197, %s200
    %p209 = scmp.eq.s32.totalorder %s24, 3
    %p210 = por %p208, %p209
    %p211 = scmp.ne.s32.totalorder %s200, %s201
    %p212 = scmp.eq.s32.totalorder %s24, 0
    %p213 = por %p211, %p212
    %p214 = scmp.ne.s32.totalorder %s200, %s201
    %p215 = scmp.eq.s32.totalorder %s25, 3
    %p216 = por %p214, %p215
    %p218 = scmp.ne.s32.totalorder %s201, %s217
    %p219 = scmp.eq.s32.totalorder %s25, 0
    %p220 = por %p218, %p219
    %s221 = ssub.s32 %s27, %s34
    %p222 = scmp.eq.s32.totalorder %s221, 0
    %s224 = sadd.s32 %s223, 1
    %s225 = scalar_select %p222, %s223, %s224
    %p228 = pneg %p222
    %p229 = scmp.eq.s32.totalorder %s19, 3
    %p230 = por %p228, %p229
    %p231 = scmp.ne.s32.totalorder %s223, %s226
    %p232 = scmp.eq.s32.totalorder %s19, 0
    %p233 = por %p231, %p232
    %p234 = scmp.ne.s32.totalorder %s223, %s226
    %p235 = scmp.eq.s32.totalorder %s24, 3
    %p236 = por %p234, %p235
    %p237 = scmp.ne.s32.totalorder %s226, %s227
    %p238 = scmp.eq.s32.totalorder %s24, 0
    %p239 = por %p237, %p238
    %p240 = scmp.ne.s32.totalorder %s226, %s227
    %p241 = scmp.eq.s32.totalorder %s25, 3
    %p242 = por %p240, %p241
    %p244 = scmp.ne.s32.totalorder %s227, %s243
    %p245 = scmp.eq.s32.totalorder %s25, 0
    %p246 = por %p244, %p245
    %s247 = ssub.s32 %s27, %s34
    %p248 = scmp.eq.s32.totalorder %s247, 0
    %s250 = sadd.s32 %s249, 1
    %s251 = scalar_select %p248, %s249, %s250
    %p254 = pneg %p248
    %p255 = scmp.eq.s32.totalorder %s19, 3
    %p256 = por %p254, %p255
    %p257 = scmp.ne.s32.totalorder %s249, %s252
    %p258 = scmp.eq.s32.totalorder %s19, 0
    %p259 = por %p257, %p258
    %p260 = scmp.ne.s32.totalorder %s249, %s252
    %p261 = scmp.eq.s32.totalorder %s24, 3
    %p262 = por %p260, %p261
    %p263 = scmp.ne.s32.totalorder %s252, %s253
    %p264 = scmp.eq.s32.totalorder %s24, 0
    %p265 = por %p263, %p264
    %p266 = scmp.ne.s32.totalorder %s252, %s253
    %p267 = scmp.eq.s32.totalorder %s25, 3
    %p268 = por %p266, %p267
    %p270 = scmp.ne.s32.totalorder %s253, %s269
    %p271 = scmp.eq.s32.totalorder %s25, 0
    %p272 = por %p270, %p271
    %s273 = ssub.s32 %s27, %s34
    %p274 = scmp.eq.s32.totalorder %s273, 0
    %s276 = sadd.s32 %s275, 1
    %s277 = scalar_select %p274, %s275, %s276
    %p280 = pneg %p274
    %p281 = scmp.eq.s32.totalorder %s19, 3
    %p282 = por %p280, %p281
    %p283 = scmp.ne.s32.totalorder %s275, %s278
    %p284 = scmp.eq.s32.totalorder %s19, 0
    %p285 = por %p283, %p284
    %p286 = scmp.ne.s32.totalorder %s275, %s278
    %p287 = scmp.eq.s32.totalorder %s24, 3
    %p288 = por %p286, %p287
    %p289 = scmp.ne.s32.totalorder %s278, %s279
    %p290 = scmp.eq.s32.totalorder %s24, 0
    %p291 = por %p289, %p290
    %p292 = scmp.ne.s32.totalorder %s278, %s279
    %p293 = scmp.eq.s32.totalorder %s25, 3
    %p294 = por %p292, %p293
    %p296 = scmp.ne.s32.totalorder %s279, %s295
    %p297 = scmp.eq.s32.totalorder %s25, 0
    %p298 = por %p296, %p297
    %s299 = ssub.s32 %s27, %s34
    %p300 = scmp.eq.s32.totalorder %s299, 0
    %s302 = sadd.s32 %s301, 1
    %s303 = scalar_select %p300, %s301, %s302
    %p306 = pneg %p300
    %p307 = scmp.eq.s32.totalorder %s19, 3
    %p308 = por %p306, %p307
    %p309 = scmp.ne.s32.totalorder %s301, %s304
    %p310 = scmp.eq.s32.totalorder %s19, 0
    %p311 = por %p309, %p310
    %p312 = scmp.ne.s32.totalorder %s301, %s304
    %p313 = scmp.eq.s32.totalorder %s24, 3
    %p314 = por %p312, %p313
    %p315 = scmp.ne.s32.totalorder %s304, %s305
    %p316 = scmp.eq.s32.totalorder %s24, 0
    %p317 = por %p315, %p316
    %p318 = scmp.ne.s32.totalorder %s304, %s305
    %p319 = scmp.eq.s32.totalorder %s25, 3
    %p320 = por %p318, %p319
    %p322 = scmp.ne.s32.totalorder %s305, %s321
    %p323 = scmp.eq.s32.totalorder %s25, 0
    %p324 = por %p322, %p323
    %s325 = ssub.s32 %s27, %s34
    %p326 = scmp.eq.s32.totalorder %s325, 0
    %s328 = sadd.s32 %s327, 1
    %s329 = scalar_select %p326, %s327, %s328
    %p332 = pneg %p326
    %p333 = scmp.eq.s32.totalorder %s19, 3
    %p334 = por %p332, %p333
    %p335 = scmp.ne.s32.totalorder %s327, %s330
    %p336 = scmp.eq.s32.totalorder %s19, 0
    %p337 = por %p335, %p336
    %p338 = scmp.ne.s32.totalorder %s327, %s330
    %p339 = scmp.eq.s32.totalorder %s24, 3
    %p340 = por %p338, %p339
    %p341 = scmp.ne.s32.totalorder %s330, %s331
    %p342 = scmp.eq.s32.totalorder %s24, 0
    %p343 = por %p341, %p342
    %p344 = scmp.ne.s32.totalorder %s330, %s331
    %p345 = scmp.eq.s32.totalorder %s25, 3
    %p346 = por %p344, %p345
    %p348 = scmp.ne.s32.totalorder %s331, %s347
    %p349 = scmp.eq.s32.totalorder %s25, 0
    %p350 = por %p348, %p349
    %s351 = ssub.s32 %s27, %s34
    %p352 = scmp.eq.s32.totalorder %s351, 0
    %s354 = sadd.s32 %s353, 1
    %s355 = scalar_select %p352, %s353, %s354
    %p358 = pneg %p352
    %p359 = scmp.eq.s32.totalorder %s19, 3
    %p360 = por %p358, %p359
    %p361 = scmp.ne.s32.totalorder %s353, %s356
    %p362 = scmp.eq.s32.totalorder %s19, 0
    %p363 = por %p361, %p362
    %p364 = scmp.ne.s32.totalorder %s353, %s356
    %p365 = scmp.eq.s32.totalorder %s24, 3
    %p366 = por %p364, %p365
    %p367 = scmp.ne.s32.totalorder %s356, %s357
    %p368 = scmp.eq.s32.totalorder %s24, 0
    %p369 = por %p367, %p368
    %p370 = scmp.ne.s32.totalorder %s356, %s357
    %p371 = scmp.eq.s32.totalorder %s25, 3
    %p372 = por %p370, %p371
    %p374 = scmp.ne.s32.totalorder %s357, %s373
    %p375 = scmp.eq.s32.totalorder %s25, 0
    %p376 = por %p374, %p375
    %s377 = ssub.s32 %s26, %s38
    %p378 = scmp.eq.s32.totalorder %s377, 0
    %s380 = sadd.s32 %s379, 1
    %s381 = scalar_select %p378, %s379, %s380
    %p384 = pneg %p378
    %p385 = scmp.eq.s32.totalorder %s19, 3
    %p386 = por %p384, %p385
    %p387 = scmp.ne.s32.totalorder %s379, %s382
    %p388 = scmp.eq.s32.totalorder %s19, 0
    %p389 = por %p387, %p388
    %p390 = scmp.ne.s32.totalorder %s379, %s382
    %p391 = scmp.eq.s32.totalorder %s24, 3
    %p392 = por %p390, %p391
    %p393 = scmp.ne.s32.totalorder %s382, %s383
    %p394 = scmp.eq.s32.totalorder %s24, 0
    %p395 = por %p393, %p394
    %p396 = scmp.ne.s32.totalorder %s382, %s383
    %p397 = scmp.eq.s32.totalorder %s25, 3
    %p398 = por %p396, %p397
    %p400 = scmp.ne.s32.totalorder %s383, %s399
    %p401 = scmp.eq.s32.totalorder %s25, 0
    %p402 = por %p400, %p401
    %p403 = scmp.le.s32.totalorder 1, %s19
    %p404 = scmp.lt.s32.totalorder %s19, 5
    %p405 = pnand %p403, %p404
    %p406 = pneg %p405
    // Predicated region
    $region9: #{transformer_pallas.1} parent=5 // pred_check
      _
    $region10: #{transformer_pallas.1} parent=5 // pred_check_branch
      %408 = sbr.rel (%p405) target = $region12
    $region11: #{transformer_pallas.1} parent=5 // pred_region
      %s409 = ssub.s32 %s19, 1
    $region12: #{transformer_pallas.1} parent=5 // pred_fallthru
      _
    %p410 = scmp.lt.s32.totalorder %s19, 4
    // Predicated region
    $region13: #{transformer_pallas.1} parent=5 // pred_check
      %p411 = pneg %p410
    $region14: #{transformer_pallas.1} parent=5 // pred_check_branch
      %413 = sbr.rel (%p411) target = $region16
    $region15: #{transformer_pallas.1} parent=5 // pred_region
      // Predicated region
      $region17: #{transformer_pallas.1} parent=15 // pred_check
        %p414 = pneg %p51
      $region18: #{transformer_pallas.1} parent=15 // pred_check_branch
        %416 = sbr.rel (%p414) target = $region20
      $region19: #{transformer_pallas.1} parent=15 // pred_region
        %p417 = scmp.lt.s32.totalorder %s26, 1
        %s418 = scalar_select %p417, %s26, 1
        %s419 = smul.addr %s418, 8
        %s420 = scalar_lea.vmem %s0, %s419
      $region20: #{transformer_pallas.1} parent=15 // pred_fallthru
        _
      // Predicated region
      $region21: #{transformer_pallas.1} parent=15 // pred_check
        %p421 = pneg %p77
      $region22: #{transformer_pallas.1} parent=15 // pred_check_branch
        %423 = sbr.rel (%p421) target = $region24
      $region23: #{transformer_pallas.1} parent=15 // pred_region
        %p424 = scmp.lt.s32.totalorder %s27, 1
        %s425 = scalar_select %p424, %s27, 1
        %s426 = scalar_lea.vmem %s1, %s425
      $region24: #{transformer_pallas.1} parent=15 // pred_fallthru
        _
      // Predicated region
      $region25: #{transformer_pallas.1} parent=15 // pred_check
        %p427 = pneg %p103
      $region26: #{transformer_pallas.1} parent=15 // pred_check_branch
        %429 = sbr.rel (%p427) target = $region28
      $region27: #{transformer_pallas.1} parent=15 // pred_region
        %p430 = scmp.lt.s32.totalorder %s27, 1
        %s431 = scalar_select %p430, %s27, 1
        %s432 = scalar_lea.vmem %s2, %s431
      $region28: #{transformer_pallas.1} parent=15 // pred_fallthru
        _
      // Predicated region
      $region29: #{transformer_pallas.1} parent=15 // pred_check
        %p433 = pneg %p129
      $region30: #{transformer_pallas.1} parent=15 // pred_check_branch
        %435 = sbr.rel (%p433) target = $region32
      $region31: #{transformer_pallas.1} parent=15 // pred_region
        %p436 = scmp.lt.s32.totalorder %s27, 1
        %s437 = scalar_select %p436, %s27, 1
        %s438 = smul.addr %s437, 4
        %s439 = smul.addr %s438, 8
        %s440 = scalar_lea.vmem %s3, %s439
      $region32: #{transformer_pallas.1} parent=15 // pred_fallthru
        _
      // Predicated region
      $region33: #{transformer_pallas.1} parent=15 // pred_check
        %p441 = pneg %p155
      $region34: #{transformer_pallas.1} parent=15 // pred_check_branch
        %443 = sbr.rel (%p441) target = $region36
      $region35: #{transformer_pallas.1} parent=15 // pred_region
        %p444 = scmp.lt.s32.totalorder %s27, 1
        %s445 = scalar_select %p444, %s27, 1
        %s446 = scalar_lea.vmem %s4, %s445
      $region36: #{transformer_pallas.1} parent=15 // pred_fallthru
        _
      // Predicated region
      $region37: #{transformer_pallas.1} parent=15 // pred_check
        %p447 = pneg %p181
      $region38: #{transformer_pallas.1} parent=15 // pred_check_branch
        %449 = sbr.rel (%p447) target = $region40
      $region39: #{transformer_pallas.1} parent=15 // pred_region
        %p450 = scmp.lt.s32.totalorder %s27, 1
        %s451 = scalar_select %p450, %s27, 1
        %s452 = smul.addr %s451, 4
        %s453 = smul.addr %s452, 8
        %s454 = scalar_lea.vmem %s5, %s453
      $region40: #{transformer_pallas.1} parent=15 // pred_fallthru
        _
      // Predicated region
      $region41: #{transformer_pallas.1} parent=15 // pred_check
        %p455 = pneg %p207
      $region42: #{transformer_pallas.1} parent=15 // pred_check_branch
        %457 = sbr.rel (%p455) target = $region44
      $region43: #{transformer_pallas.1} parent=15 // pred_region
        %p458 = scmp.lt.s32.totalorder %s27, 1
        %s459 = scalar_select %p458, %s27, 1
        %s460 = scalar_lea.vmem %s6, %s459
      $region44: #{transformer_pallas.1} parent=15 // pred_fallthru
        _
      // Predicated region
      $region45: #{transformer_pallas.1} parent=15 // pred_check
        %p461 = pneg %p233
      $region46: #{transformer_pallas.1} parent=15 // pred_check_branch
        %463 = sbr.rel (%p461) target = $region48
      $region47: #{transformer_pallas.1} parent=15 // pred_region
        %p464 = scmp.lt.s32.totalorder %s27, 1
        %s465 = scalar_select %p464, %s27, 1
        %s466 = scalar_lea.vmem %s7, %s465
      $region48: #{transformer_pallas.1} parent=15 // pred_fallthru
        _
      // Predicated region
      $region49: #{transformer_pallas.1} parent=15 // pred_check
        %p467 = pneg %p259
      $region50: #{transformer_pallas.1} parent=15 // pred_check_branch
        %469 = sbr.rel (%p467) target = $region52
      $region51: #{transformer_pallas.1} parent=15 // pred_region
        %p470 = scmp.lt.s32.totalorder %s27, 1
        %s471 = scalar_select %p470, %s27, 1
        %s472 = scalar_lea.vmem %s8, %s471
      $region52: #{transformer_pallas.1} parent=15 // pred_fallthru
        _
      // Predicated region
      $region53: #{transformer_pallas.1} parent=15 // pred_check
        %p473 = pneg %p285
      $region54: #{transformer_pallas.1} parent=15 // pred_check_branch
        %475 = sbr.rel (%p473) target = $region56
      $region55: #{transformer_pallas.1} parent=15 // pred_region
        %p476 = scmp.lt.s32.totalorder %s27, 1
        %s477 = scalar_select %p476, %s27, 1
        %s478 = smul.addr %s477, 4
        %s479 = smul.addr %s478, 8
        %s480 = scalar_lea.vmem %s9, %s479
      $region56: #{transformer_pallas.1} parent=15 // pred_fallthru
        _
      // Predicated region
      $region57: #{transformer_pallas.1} parent=15 // pred_check
        %p481 = pneg %p311
      $region58: #{transformer_pallas.1} parent=15 // pred_check_branch
        %483 = sbr.rel (%p481) target = $region60
      $region59: #{transformer_pallas.1} parent=15 // pred_region
        %p484 = scmp.lt.s32.totalorder %s27, 1
        %s485 = scalar_select %p484, %s27, 1
        %s486 = scalar_lea.vmem %s10, %s485
      $region60: #{transformer_pallas.1} parent=15 // pred_fallthru
        _
      // Predicated region
      $region61: #{transformer_pallas.1} parent=15 // pred_check
        %p487 = pneg %p337
      $region62: #{transformer_pallas.1} parent=15 // pred_check_branch
        %489 = sbr.rel (%p487) target = $region64
      $region63: #{transformer_pallas.1} parent=15 // pred_region
        %p490 = scmp.lt.s32.totalorder %s27, 1
        %s491 = scalar_select %p490, %s27, 1
        %s492 = smul.addr %s491, 16
        %s493 = smul.addr %s492, 8
        %s494 = scalar_lea.vmem %s11, %s493
      $region64: #{transformer_pallas.1} parent=15 // pred_fallthru
        _
      // Predicated region
      $region65: #{transformer_pallas.1} parent=15 // pred_check
        %p495 = pneg %p363
      $region66: #{transformer_pallas.1} parent=15 // pred_check_branch
        %497 = sbr.rel (%p495) target = $region68
      $region67: #{transformer_pallas.1} parent=15 // pred_region
        %p498 = scmp.lt.s32.totalorder %s27, 1
        %s499 = scalar_select %p498, %s27, 1
        %s500 = scalar_lea.vmem %s12, %s499
      $region68: #{transformer_pallas.1} parent=15 // pred_fallthru
        _
    $region16: #{transformer_pallas.1} parent=5 // pred_fallthru
      _
    %p501 = scmp.le.s32.totalorder 1, %s19
    %p502 = scmp.lt.s32.totalorder %s19, 5
    %p503 = pnand %p501, %p502
    %p504 = pneg %p503
    // Predicated region
    $region69: #{transformer_pallas.1} parent=5 // pred_check
      _
    $region70: #{transformer_pallas.1} parent=5 // pred_check_branch
      %506 = sbr.rel (%p503) target = $region72
    $region71: #{transformer_pallas.1} parent=5 // pred_region
      %s507 = ssub.s32 %s19, 1
      %p508 = scmp.lt.s32.totalorder %s28, 1
      %s509 = scalar_select %p508, %s28, 1
      %s510 = smul.addr %s509, 8
      %s511 = scalar_lea.vmem %s0, %s510
      %p512 = pneg %p57
      %p513 = pneg %p54
      %p514 = scmp.lt.s32.totalorder %s29, 1
      %s515 = scalar_select %p514, %s29, 1
      %s516 = scalar_lea.vmem %s1, %s515
      %p517 = pneg %p83
      %p518 = pneg %p80
      %p519 = scmp.lt.s32.totalorder %s29, 1
      %s520 = scalar_select %p519, %s29, 1
      %s521 = scalar_lea.vmem %s2, %s520
      %p522 = pneg %p109
      %p523 = pneg %p106
      %p524 = scmp.lt.s32.totalorder %s29, 1
      %s525 = scalar_select %p524, %s29, 1
      %s526 = smul.addr %s525, 4
      %s527 = smul.addr %s526, 8
      %s528 = scalar_lea.vmem %s3, %s527
      %p529 = pneg %p135
      %p530 = pneg %p132
      %p531 = scmp.lt.s32.totalorder %s29, 1
      %s532 = scalar_select %p531, %s29, 1
      %s533 = scalar_lea.vmem %s4, %s532
      %p534 = pneg %p161
      %p535 = pneg %p158
      %p536 = scmp.lt.s32.totalorder %s29, 1
      %s537 = scalar_select %p536, %s29, 1
      %s538 = smul.addr %s537, 4
      %s539 = smul.addr %s538, 8
      %s540 = scalar_lea.vmem %s5, %s539
      %p541 = pneg %p187
      %p542 = pneg %p184
      %p543 = scmp.lt.s32.totalorder %s29, 1
      %s544 = scalar_select %p543, %s29, 1
      %s545 = scalar_lea.vmem %s6, %s544
      %p546 = pneg %p213
      %p547 = pneg %p210
      %p548 = scmp.lt.s32.totalorder %s29, 1
      %s549 = scalar_select %p548, %s29, 1
      %s550 = scalar_lea.vmem %s7, %s549
      %p551 = pneg %p239
      %p552 = pneg %p236
      %p553 = scmp.lt.s32.totalorder %s29, 1
      %s554 = scalar_select %p553, %s29, 1
      %s555 = scalar_lea.vmem %s8, %s554
      %p556 = pneg %p265
      %p557 = pneg %p262
      %p558 = scmp.lt.s32.totalorder %s29, 1
      %s559 = scalar_select %p558, %s29, 1
      %s560 = smul.addr %s559, 4
      %s561 = smul.addr %s560, 8
      %s562 = scalar_lea.vmem %s9, %s561
      %p563 = pneg %p291
      %p564 = pneg %p288
      %p565 = scmp.lt.s32.totalorder %s29, 1
      %s566 = scalar_select %p565, %s29, 1
      %s567 = scalar_lea.vmem %s10, %s566
      %p568 = pneg %p317
      %p569 = pneg %p314
      %p570 = scmp.lt.s32.totalorder %s29, 1
      %s571 = scalar_select %p570, %s29, 1
      %s572 = smul.addr %s571, 16
      %s573 = smul.addr %s572, 8
      %s574 = scalar_lea.vmem %s11, %s573
      %p575 = pneg %p343
      %p576 = pneg %p340
      %p577 = scmp.lt.s32.totalorder %s29, 1
      %s578 = scalar_select %p577, %s29, 1
      %s579 = scalar_lea.vmem %s12, %s578
      %p580 = pneg %p369
      %p581 = pneg %p366
      %p582 = pneg %p395
      %p583 = pneg %p392
      %p584 = scmp.lt.s32.totalorder %s28, 1
      %s585 = scalar_select %p584, %s28, 1
      %s586 = smul.addr %s585, 8
      %s587 = scalar_lea.vmem %s13, %s586
      %p588 = scmp.lt.s32.totalorder %s28, 1
      %s589 = scalar_select %p588, %s28, 1
      %s590 = smul.addr %s589, 8
      %s591 = scalar_lea.vmem %s0, %s590
      %p592 = scmp.lt.s32.totalorder %s29, 1
      %s593 = scalar_select %p592, %s29, 1
      %s594 = scalar_lea.vmem %s1, %s593
      %p595 = scmp.lt.s32.totalorder %s29, 1
      %s596 = scalar_select %p595, %s29, 1
      %s597 = scalar_lea.vmem %s2, %s596
      %p598 = scmp.lt.s32.totalorder %s29, 1
      %s599 = scalar_select %p598, %s29, 1
      %s600 = smul.addr %s599, 4
      %s601 = smul.addr %s600, 8
      %s602 = scalar_lea.vmem %s3, %s601
      %p603 = scmp.lt.s32.totalorder %s29, 1
      %s604 = scalar_select %p603, %s29, 1
      %s605 = scalar_lea.vmem %s4, %s604
      %p606 = scmp.lt.s32.totalorder %s29, 1
      %s607 = scalar_select %p606, %s29, 1
      %s608 = smul.addr %s607, 4
      %s609 = smul.addr %s608, 8
      %s610 = scalar_lea.vmem %s5, %s609
      %p611 = scmp.lt.s32.totalorder %s29, 1
      %s612 = scalar_select %p611, %s29, 1
      %s613 = scalar_lea.vmem %s6, %s612
      %p614 = scmp.lt.s32.totalorder %s29, 1
      %s615 = scalar_select %p614, %s29, 1
      %s616 = scalar_lea.vmem %s7, %s615
      %p617 = scmp.lt.s32.totalorder %s29, 1
      %s618 = scalar_select %p617, %s29, 1
      %s619 = scalar_lea.vmem %s8, %s618
      %p620 = scmp.lt.s32.totalorder %s29, 1
      %s621 = scalar_select %p620, %s29, 1
      %s622 = smul.addr %s621, 4
      %s623 = smul.addr %s622, 8
      %s624 = scalar_lea.vmem %s9, %s623
      %p625 = scmp.lt.s32.totalorder %s29, 1
      %s626 = scalar_select %p625, %s29, 1
      %s627 = scalar_lea.vmem %s10, %s626
      %p628 = scmp.lt.s32.totalorder %s29, 1
      %s629 = scalar_select %p628, %s29, 1
      %s630 = smul.addr %s629, 16
      %s631 = smul.addr %s630, 8
      %s632 = scalar_lea.vmem %s11, %s631
      %p633 = scmp.lt.s32.totalorder %s29, 1
      %s634 = scalar_select %p633, %s29, 1
      %s635 = scalar_lea.vmem %s12, %s634
      %p636 = scmp.lt.s32.totalorder %s28, 1
      %s637 = scalar_select %p636, %s28, 1
      %s638 = smul.addr %s637, 8
      %s639 = scalar_lea.vmem %s13, %s638
      %p640 = scmp.eq.s32.totalorder %s29, 0
      // Predicated region
      $region73: #{transformer_pallas.1} parent=71 // pred_check
        %p641 = pneg %p640
      $region74: #{transformer_pallas.1} parent=71 // pred_check_branch
        %643 = sbr.rel (%p641) target = $region76
      $region75: #{transformer_pallas.1} parent=71 // pred_region
        %v644 = vld [vmem:[%s591] sm:$0xff]
        %vm645 = vcmask 261120
        %646 = vst.msk [vmem:[%s639] sm:$0xff] %vm645, %v644
      $region76: #{transformer_pallas.1} parent=71 // pred_fallthru
        _
      %v647 = vld [vmem:[%s639] sm:$0xff]
      %v648 = vld [vmem:[%s594] sm:$0x1]
      %v649 = vld [vmem:[%s597] sm:$0x1]
      %vm650 = vcmask 261120
      %v651 = vsel %vm650, %v647, 0.0
      %652 = vadd.xlane.f32.xlu0 %v651
      %v653 = vpop.xlane.xlu0 %652
      %v654 = vrcp.pop 32.0
      %v655 = vmul.f32 %v653, %v654
      %v656 = vsub.f32 %v647, %v655
      %v657 = vmul.f32 %v656, %v656
      %v658 = vsel %vm650, %v657, 0.0
      %659 = vadd.xlane.f32.xlu0 %v658
      %v660 = vpop.xlane.xlu0 %659
      %v661 = vmul.f32 %v660, %v654
      %v662 = vadd.f32 %v661, 1e-05
      %v663 = vrsqrt.pop %v662
      %v664 = vmul.f32 %v656, %v663
      %v666 = vlaneseq
      %v667 = vshrl.u32 %v666, 7
      %v668 = vsub.s32 0, %v667
      %v669 = vrot.slane %v648, %v668
      %v671 = vmul.f32 %v664, %v669
      %v673 = vlaneseq
      %v674 = vshrl.u32 %v673, 7
      %v675 = vsub.s32 0, %v674
      %v676 = vrot.slane %v649, %v675
      %v678 = vadd.f32 %v671, %v676
      %v679 = vld [vmem:[%s602] sm:$0xff]
      %v680 = vld [vmem:[%s602 + $0x8] sm:$0xff]
      %v681 = vld [vmem:[%s602 + $0x10] sm:$0xff]
      %v682 = vld [vmem:[%s602 + $0x18] sm:$0xff]
      %v683 = vld [vmem:[%s605] sm:$0x1]
      %v685 = vlaneseq
      %v686 = vshrl.u32 %v685, 7
      %v687 = vsub.s32 0, %v686
      %v688 = vrot.slane %v683, %v687
      %v691 = vsel %vm650, %v678, 0
      %693 = vmatprep.subr.mxu0 0.0
      %694 = vmatpush1.msra.mxu0 0.0
      %695 = vmatprep.subr.mxu0 0.0
      %696 = vmatpush1.msra.mxu0 0.0
      %697 = vmatprep.subr.mxu0 0.0
      %698 = vmatpush1.msra.mxu0 0.0
      %699 = vmatprep.subr.mxu0 0.0
      %700 = vmatpush1.msra.mxu0 0.0
      %701 = vmatprep.subr.mxu0 0.0
      %702 = vmatpush1.msra.mxu0 0.0
      %703 = vmatprep.subr.mxu0 0.0
      %704 = vmatpush1.msra.mxu0 0.0
      %705 = vmatprep.subr.mxu0 0.0
      %706 = vmatpush1.msra.mxu0 0.0
      %707 = vmatprep.subr.mxu0 0.0
      %708 = vmatpush1.msra.mxu0 0.0
      %709 = vmatprep.subr.mxu0 0.0
      %710 = vmatpush1.msra.mxu0 0.0
      %711 = vmatprep.subr.mxu0 0.0
      %712 = vmatpush1.msra.mxu0 0.0
      %713 = vmatprep.subr.mxu0 0.0
      %714 = vmatpush1.msra.mxu0 0.0
      %715 = vmatprep.subr.mxu0 0.0
      %716 = vmatpush1.msra.mxu0 0.0
      %717 = vmatprep.subr.mxu0 0.0
      %718 = vmatpush1.msra.mxu0 %v682
      %719 = vmatprep.subr.mxu0 0.0
      %720 = vmatpush1.msra.mxu0 %v681
      %721 = vmatprep.subr.mxu0 0.0
      %722 = vmatpush1.msra.mxu0 %v680
      %723 = vmatprep.subr.mxu0 0.0
      %724 = vmatpush1.msra.mxu0 %v679
      %725 = vmatprep.subr.mxu0 0.0
      %726 = vmatpush2.msra.mxu0 0.0
      %727 = vmatprep.subr.mxu0 0.0
      %728 = vmatpush2.msra.mxu0 0.0
      %729 = vmatprep.subr.mxu0 0.0
      %730 = vmatpush2.msra.mxu0 0.0
      %731 = vmatprep.subr.mxu0 0.0
      %732 = vmatpush2.msra.mxu0 0.0
      %733 = vmatprep.subr.mxu0 0.0
      %734 = vmatpush2.msra.mxu0 0.0
      %735 = vmatprep.subr.mxu0 0.0
      %736 = vmatpush2.msra.mxu0 0.0
      %737 = vmatprep.subr.mxu0 0.0
      %738 = vmatpush2.msra.mxu0 0.0
      %739 = vmatprep.subr.mxu0 0.0
      %740 = vmatpush2.msra.mxu0 0.0
      %741 = vmatprep.subr.mxu0 0.0
      %742 = vmatpush2.msra.mxu0 0.0
      %743 = vmatprep.subr.mxu0 0.0
      %744 = vmatpush2.msra.mxu0 0.0
      %745 = vmatprep.subr.mxu0 0.0
      %746 = vmatpush2.msra.mxu0 0.0
      %747 = vmatprep.subr.mxu0 0.0
      %748 = vmatpush2.msra.mxu0 0.0
      %749 = vmatprep.subr.mxu0 0.0
      %750 = vmatpush2.msra.mxu0 0.0
      %751 = vmatprep.subr.mxu0 0.0
      %752 = vmatpush2.msra.mxu0 0.0
      %753 = vmatprep.subr.mxu0 0.0
      %754 = vmatpush2.msra.mxu0 0.0
      %755 = vmatprep.subr.mxu0 0.0
      %756 = vmatpush2.msra.mxu0 0.0
      %757 = vmatprep.mubr.f32.mxu0 0.0
      %758 = vmatmul.mubr.f32.gmra.mxu0 %v691
      %v759 = vpop.f32.mrf.mxu0
      %v760 = vadd.f32 %v688, %v759
      %v761 = vpop.f32.mrf.mxu0
      %762 = vdwg.mxu0
      %v763 = vmul.f32 %v760, 0.35355338
      %765 = vrot.lane.b32.xlu0 %v763, 120
      %v766 = vpop.permute.xlu0 %765
      %767 = vrot.lane.b32.xlu0 %v763, 112
      %v768 = vpop.permute.xlu0 %767
      %769 = vrot.lane.b32.xlu0 %v763, 104
      %v770 = vpop.permute.xlu0 %769
      %772 = vrot.lane.b32.xlu0 %v760, 120
      %v773 = vpop.permute.xlu0 %772
      %774 = vrot.lane.b32.xlu0 %v760, 112
      %v775 = vpop.permute.xlu0 %774
      %776 = vrot.lane.b32.xlu0 %v760, 104
      %v777 = vpop.permute.xlu0 %776
      %778 = vrot.lane.b32.xlu0 %v760, 96
      %v779 = vpop.permute.xlu0 %778
      %780 = vrot.lane.b32.xlu0 %v773, 96
      %v781 = vpop.permute.xlu0 %780
      %782 = vrot.lane.b32.xlu0 %v775, 96
      %v783 = vpop.permute.xlu0 %782
      %784 = vrot.lane.b32.xlu0 %v777, 96
      %v785 = vpop.permute.xlu0 %784
      %790 = vxpose.xlu0.b32.start [1/16] %v779, 128
      %791 = vxpose.xlu0.b32.cont [2/16] 0.0, 128
      %792 = vxpose.xlu0.b32.cont [3/16] 0.0, 128
      %793 = vxpose.xlu0.b32.cont [4/16] 0.0, 128
      %794 = vxpose.xlu0.b32.cont [5/16] 0.0, 128
      %795 = vxpose.xlu0.b32.cont [6/16] 0.0, 128
      %796 = vxpose.xlu0.b32.cont [7/16] 0.0, 128
      %797 = vxpose.xlu0.b32.cont [8/16] 0.0, 128
      %798 = vxpose.xlu0.b32.cont [9/16] 0.0, 128
      %799 = vxpose.xlu0.b32.cont [10/16] 0.0, 128
      %800 = vxpose.xlu0.b32.cont [11/16] 0.0, 128
      %801 = vxpose.xlu0.b32.cont [12/16] 0.0, 128
      %802 = vxpose.xlu0.b32.cont [13/16] 0.0, 128
      %803 = vxpose.xlu0.b32.cont [14/16] 0.0, 128
      %804 = vxpose.xlu0.b32.cont [15/16] 0.0, 128
      %805 = vxpose.xlu0.b32.end [16/16] 0.0, 128
      %v806 = vpop.trf.xlu0
      %v807 = vpop.trf.xlu0
      %v808 = vpop.trf.xlu0
      %v809 = vpop.trf.xlu0
      %v810 = vpop.trf.xlu0
      %v811 = vpop.trf.xlu0
      %v812 = vpop.trf.xlu0
      %v813 = vpop.trf.xlu0
      %v814 = vpop.trf.xlu0
      %v815 = vpop.trf.xlu0
      %v816 = vpop.trf.xlu0
      %v817 = vpop.trf.xlu0
      %v818 = vpop.trf.xlu0
      %v819 = vpop.trf.xlu0
      %v820 = vpop.trf.xlu0
      %v821 = vpop.trf.xlu0
      %822 = vxpose.xlu0.b32.start [1/16] %v781, 128
      %823 = vxpose.xlu0.b32.cont [2/16] 0.0, 128
      %824 = vxpose.xlu0.b32.cont [3/16] 0.0, 128
      %825 = vxpose.xlu0.b32.cont [4/16] 0.0, 128
      %826 = vxpose.xlu0.b32.cont [5/16] 0.0, 128
      %827 = vxpose.xlu0.b32.cont [6/16] 0.0, 128
      %828 = vxpose.xlu0.b32.cont [7/16] 0.0, 128
      %829 = vxpose.xlu0.b32.cont [8/16] 0.0, 128
      %830 = vxpose.xlu0.b32.cont [9/16] 0.0, 128
      %831 = vxpose.xlu0.b32.cont [10/16] 0.0, 128
      %832 = vxpose.xlu0.b32.cont [11/16] 0.0, 128
      %833 = vxpose.xlu0.b32.cont [12/16] 0.0, 128
      %834 = vxpose.xlu0.b32.cont [13/16] 0.0, 128
      %835 = vxpose.xlu0.b32.cont [14/16] 0.0, 128
      %836 = vxpose.xlu0.b32.cont [15/16] 0.0, 128
      %837 = vxpose.xlu0.b32.end [16/16] 0.0, 128
      %v838 = vpop.trf.xlu0
      %v839 = vpop.trf.xlu0
      %v840 = vpop.trf.xlu0
      %v841 = vpop.trf.xlu0
      %v842 = vpop.trf.xlu0
      %v843 = vpop.trf.xlu0
      %v844 = vpop.trf.xlu0
      %v845 = vpop.trf.xlu0
      %v846 = vpop.trf.xlu0
      %v847 = vpop.trf.xlu0
      %v848 = vpop.trf.xlu0
      %v849 = vpop.trf.xlu0
      %v850 = vpop.trf.xlu0
      %v851 = vpop.trf.xlu0
      %v852 = vpop.trf.xlu0
      %v853 = vpop.trf.xlu0
      %854 = vxpose.xlu0.b32.start [1/16] %v783, 128
      %855 = vxpose.xlu0.b32.cont [2/16] 0.0, 128
      %856 = vxpose.xlu0.b32.cont [3/16] 0.0, 128
      %857 = vxpose.xlu0.b32.cont [4/16] 0.0, 128
      %858 = vxpose.xlu0.b32.cont [5/16] 0.0, 128
      %859 = vxpose.xlu0.b32.cont [6/16] 0.0, 128
      %860 = vxpose.xlu0.b32.cont [7/16] 0.0, 128
      %861 = vxpose.xlu0.b32.cont [8/16] 0.0, 128
      %862 = vxpose.xlu0.b32.cont [9/16] 0.0, 128
      %863 = vxpose.xlu0.b32.cont [10/16] 0.0, 128
      %864 = vxpose.xlu0.b32.cont [11/16] 0.0, 128
      %865 = vxpose.xlu0.b32.cont [12/16] 0.0, 128
      %866 = vxpose.xlu0.b32.cont [13/16] 0.0, 128
      %867 = vxpose.xlu0.b32.cont [14/16] 0.0, 128
      %868 = vxpose.xlu0.b32.cont [15/16] 0.0, 128
      %869 = vxpose.xlu0.b32.end [16/16] 0.0, 128
      %v870 = vpop.trf.xlu0
      %v871 = vpop.trf.xlu0
      %v872 = vpop.trf.xlu0
      %v873 = vpop.trf.xlu0
      %v874 = vpop.trf.xlu0
      %v875 = vpop.trf.xlu0
      %v876 = vpop.trf.xlu0
      %v877 = vpop.trf.xlu0
      %v878 = vpop.trf.xlu0
      %v879 = vpop.trf.xlu0
      %v880 = vpop.trf.xlu0
      %v881 = vpop.trf.xlu0
      %v882 = vpop.trf.xlu0
      %v883 = vpop.trf.xlu0
      %v884 = vpop.trf.xlu0
      %v885 = vpop.trf.xlu0
      %886 = vxpose.xlu0.b32.start [1/16] %v785, 128
      %887 = vxpose.xlu0.b32.cont [2/16] 0.0, 128
      %888 = vxpose.xlu0.b32.cont [3/16] 0.0, 128
      %889 = vxpose.xlu0.b32.cont [4/16] 0.0, 128
      %890 = vxpose.xlu0.b32.cont [5/16] 0.0, 128
      %891 = vxpose.xlu0.b32.cont [6/16] 0.0, 128
      %892 = vxpose.xlu0.b32.cont [7/16] 0.0, 128
      %893 = vxpose.xlu0.b32.cont [8/16] 0.0, 128
      %894 = vxpose.xlu0.b32.cont [9/16] 0.0, 128
      %895 = vxpose.xlu0.b32.cont [10/16] 0.0, 128
      %896 = vxpose.xlu0.b32.cont [11/16] 0.0, 128
      %897 = vxpose.xlu0.b32.cont [12/16] 0.0, 128
      %898 = vxpose.xlu0.b32.cont [13/16] 0.0, 128
      %899 = vxpose.xlu0.b32.cont [14/16] 0.0, 128
      %900 = vxpose.xlu0.b32.cont [15/16] 0.0, 128
      %901 = vxpose.xlu0.b32.end [16/16] 0.0, 128
      %v902 = vpop.trf.xlu0
      %v903 = vpop.trf.xlu0
      %v904 = vpop.trf.xlu0
      %v905 = vpop.trf.xlu0
      %v906 = vpop.trf.xlu0
      %v907 = vpop.trf.xlu0
      %v908 = vpop.trf.xlu0
      %v909 = vpop.trf.xlu0
      %v910 = vpop.trf.xlu0
      %v911 = vpop.trf.xlu0
      %v912 = vpop.trf.xlu0
      %v913 = vpop.trf.xlu0
      %v914 = vpop.trf.xlu0
      %v915 = vpop.trf.xlu0
      %v916 = vpop.trf.xlu0
      %v917 = vpop.trf.xlu0
      %vm918 = vcmask 64512
      %v919 = vsel %vm918, %v763, 0
      %921 = vmatprep.subr.mxu0 0.0
      %922 = vmatpush1.msra.mxu0 0.0
      %923 = vmatprep.subr.mxu0 0.0
      %924 = vmatpush1.msra.mxu0 0.0
      %925 = vmatprep.subr.mxu0 0.0
      %926 = vmatpush1.msra.mxu0 0.0
      %927 = vmatprep.subr.mxu0 0.0
      %928 = vmatpush1.msra.mxu0 0.0
      %929 = vmatprep.subr.mxu0 0.0
      %930 = vmatpush1.msra.mxu0 0.0
      %931 = vmatprep.subr.mxu0 0.0
      %932 = vmatpush1.msra.mxu0 0.0
      %933 = vmatprep.subr.mxu0 0.0
      %934 = vmatpush1.msra.mxu0 0.0
      %935 = vmatprep.subr.mxu0 0.0
      %936 = vmatpush1.msra.mxu0 0.0
      %937 = vmatprep.subr.mxu0 0.0
      %938 = vmatpush1.msra.mxu0 0.0
      %939 = vmatprep.subr.mxu0 0.0
      %940 = vmatpush1.msra.mxu0 0.0
      %941 = vmatprep.subr.mxu0 0.0
      %942 = vmatpush1.msra.mxu0 0.0
      %943 = vmatprep.subr.mxu0 0.0
      %944 = vmatpush1.msra.mxu0 0.0
      %945 = vmatprep.subr.mxu0 0.0
      %946 = vmatpush1.msra.mxu0 0.0
      %947 = vmatprep.subr.mxu0 0.0
      %948 = vmatpush1.msra.mxu0 0.0
      %949 = vmatprep.subr.mxu0 0.0
      %950 = vmatpush1.msra.mxu0 0.0
      %951 = vmatprep.subr.mxu0 0.0
      %952 = vmatpush1.msra.mxu0 %v806
      %953 = vmatprep.subr.mxu0 0.0
      %954 = vmatpush2.msra.mxu0 0.0
      %955 = vmatprep.subr.mxu0 0.0
      %956 = vmatpush2.msra.mxu0 0.0
      %957 = vmatprep.subr.mxu0 0.0
      %958 = vmatpush2.msra.mxu0 0.0
      %959 = vmatprep.subr.mxu0 0.0
      %960 = vmatpush2.msra.mxu0 0.0
      %961 = vmatprep.subr.mxu0 0.0
      %962 = vmatpush2.msra.mxu0 0.0
      %963 = vmatprep.subr.mxu0 0.0
      %964 = vmatpush2.msra.mxu0 0.0
      %965 = vmatprep.subr.mxu0 0.0
      %966 = vmatpush2.msra.mxu0 0.0
      %967 = vmatprep.subr.mxu0 0.0
      %968 = vmatpush2.msra.mxu0 0.0
      %969 = vmatprep.subr.mxu0 0.0
      %970 = vmatpush2.msra.mxu0 0.0
      %971 = vmatprep.subr.mxu0 0.0
      %972 = vmatpush2.msra.mxu0 0.0
      %973 = vmatprep.subr.mxu0 0.0
      %974 = vmatpush2.msra.mxu0 0.0
      %975 = vmatprep.subr.mxu0 0.0
      %976 = vmatpush2.msra.mxu0 0.0
      %977 = vmatprep.subr.mxu0 0.0
      %978 = vmatpush2.msra.mxu0 0.0
      %979 = vmatprep.subr.mxu0 0.0
      %980 = vmatpush2.msra.mxu0 0.0
      %981 = vmatprep.subr.mxu0 0.0
      %982 = vmatpush2.msra.mxu0 0.0
      %983 = vmatprep.subr.mxu0 0.0
      %984 = vmatpush2.msra.mxu0 0.0
      %985 = vmatprep.mubr.f32.mxu0 0.0
      %986 = vmatmul.mubr.f32.gmra.mxu0 %v919
      %v987 = vpop.f32.mrf.mxu0
      %v988 = vadd.f32 0.0, %v987
      %v989 = vpop.f32.mrf.mxu0
      %990 = vdwg.mxu0
      %v991 = vsel %vm918, %v766, 0
      %993 = vmatprep.subr.mxu0 0.0
      %994 = vmatpush1.msra.mxu0 0.0
      %995 = vmatprep.subr.mxu0 0.0
      %996 = vmatpush1.msra.mxu0 0.0
      %997 = vmatprep.subr.mxu0 0.0
      %998 = vmatpush1.msra.mxu0 0.0
      %999 = vmatprep.subr.mxu0 0.0
      %1000 = vmatpush1.msra.mxu0 0.0
      %1001 = vmatprep.subr.mxu0 0.0
      %1002 = vmatpush1.msra.mxu0 0.0
      %1003 = vmatprep.subr.mxu0 0.0
      %1004 = vmatpush1.msra.mxu0 0.0
      %1005 = vmatprep.subr.mxu0 0.0
      %1006 = vmatpush1.msra.mxu0 0.0
      %1007 = vmatprep.subr.mxu0 0.0
      %1008 = vmatpush1.msra.mxu0 0.0
      %1009 = vmatprep.subr.mxu0 0.0
      %1010 = vmatpush1.msra.mxu0 0.0
      %1011 = vmatprep.subr.mxu0 0.0
      %1012 = vmatpush1.msra.mxu0 0.0
      %1013 = vmatprep.subr.mxu0 0.0
      %1014 = vmatpush1.msra.mxu0 0.0
      %1015 = vmatprep.subr.mxu0 0.0
      %1016 = vmatpush1.msra.mxu0 0.0
      %1017 = vmatprep.subr.mxu0 0.0
      %1018 = vmatpush1.msra.mxu0 0.0
      %1019 = vmatprep.subr.mxu0 0.0
      %1020 = vmatpush1.msra.mxu0 0.0
      %1021 = vmatprep.subr.mxu0 0.0
      %1022 = vmatpush1.msra.mxu0 0.0
      %1023 = vmatprep.subr.mxu0 0.0
      %1024 = vmatpush1.msra.mxu0 %v838
      %1025 = vmatprep.subr.mxu0 0.0
      %1026 = vmatpush2.msra.mxu0 0.0
      %1027 = vmatprep.subr.mxu0 0.0
      %1028 = vmatpush2.msra.mxu0 0.0
      %1029 = vmatprep.subr.mxu0 0.0
      %1030 = vmatpush2.msra.mxu0 0.0
      %1031 = vmatprep.subr.mxu0 0.0
      %1032 = vmatpush2.msra.mxu0 0.0
      %1033 = vmatprep.subr.mxu0 0.0
      %1034 = vmatpush2.msra.mxu0 0.0
      %1035 = vmatprep.subr.mxu0 0.0
      %1036 = vmatpush2.msra.mxu0 0.0
      %1037 = vmatprep.subr.mxu0 0.0
      %1038 = vmatpush2.msra.mxu0 0.0
      %1039 = vmatprep.subr.mxu0 0.0
      %1040 = vmatpush2.msra.mxu0 0.0
      %1041 = vmatprep.subr.mxu0 0.0
      %1042 = vmatpush2.msra.mxu0 0.0
      %1043 = vmatprep.subr.mxu0 0.0
      %1044 = vmatpush2.msra.mxu0 0.0
      %1045 = vmatprep.subr.mxu0 0.0
      %1046 = vmatpush2.msra.mxu0 0.0
      %1047 = vmatprep.subr.mxu0 0.0
      %1048 = vmatpush2.msra.mxu0 0.0
      %1049 = vmatprep.subr.mxu0 0.0
      %1050 = vmatpush2.msra.mxu0 0.0
      %1051 = vmatprep.subr.mxu0 0.0
      %1052 = vmatpush2.msra.mxu0 0.0
      %1053 = vmatprep.subr.mxu0 0.0
      %1054 = vmatpush2.msra.mxu0 0.0
      %1055 = vmatprep.subr.mxu0 0.0
      %1056 = vmatpush2.msra.mxu0 0.0
      %1057 = vmatprep.mubr.f32.mxu0 0.0
      %1058 = vmatmul.mubr.f32.gmra.mxu0 %v991
      %v1059 = vpop.f32.mrf.mxu0
      %v1060 = vadd.f32 0.0, %v1059
      %v1061 = vpop.f32.mrf.mxu0
      %1062 = vdwg.mxu0
      %v1063 = vsel %vm918, %v768, 0
      %1065 = vmatprep.subr.mxu0 0.0
      %1066 = vmatpush1.msra.mxu0 0.0
      %1067 = vmatprep.subr.mxu0 0.0
      %1068 = vmatpush1.msra.mxu0 0.0
      %1069 = vmatprep.subr.mxu0 0.0
      %1070 = vmatpush1.msra.mxu0 0.0
      %1071 = vmatprep.subr.mxu0 0.0
      %1072 = vmatpush1.msra.mxu0 0.0
      %1073 = vmatprep.subr.mxu0 0.0
      %1074 = vmatpush1.msra.mxu0 0.0
      %1075 = vmatprep.subr.mxu0 0.0
      %1076 = vmatpush1.msra.mxu0 0.0
      %1077 = vmatprep.subr.mxu0 0.0
      %1078 = vmatpush1.msra.mxu0 0.0
      %1079 = vmatprep.subr.mxu0 0.0
      %1080 = vmatpush1.msra.mxu0 0.0
      %1081 = vmatprep.subr.mxu0 0.0
      %1082 = vmatpush1.msra.mxu0 0.0
      %1083 = vmatprep.subr.mxu0 0.0
      %1084 = vmatpush1.msra.mxu0 0.0
      %1085 = vmatprep.subr.mxu0 0.0
      %1086 = vmatpush1.msra.mxu0 0.0
      %1087 = vmatprep.subr.mxu0 0.0
      %1088 = vmatpush1.msra.mxu0 0.0
      %1089 = vmatprep.subr.mxu0 0.0
      %1090 = vmatpush1.msra.mxu0 0.0
      %1091 = vmatprep.subr.mxu0 0.0
      %1092 = vmatpush1.msra.mxu0 0.0
      %1093 = vmatprep.subr.mxu0 0.0
      %1094 = vmatpush1.msra.mxu0 0.0
      %1095 = vmatprep.subr.mxu0 0.0
      %1096 = vmatpush1.msra.mxu0 %v870
      %1097 = vmatprep.subr.mxu0 0.0
      %1098 = vmatpush2.msra.mxu0 0.0
      %1099 = vmatprep.subr.mxu0 0.0
      %1100 = vmatpush2.msra.mxu0 0.0
      %1101 = vmatprep.subr.mxu0 0.0
      %1102 = vmatpush2.msra.mxu0 0.0
      %1103 = vmatprep.subr.mxu0 0.0
      %1104 = vmatpush2.msra.mxu0 0.0
      %1105 = vmatprep.subr.mxu0 0.0
      %1106 = vmatpush2.msra.mxu0 0.0
      %1107 = vmatprep.subr.mxu0 0.0
      %1108 = vmatpush2.msra.mxu0 0.0
      %1109 = vmatprep.subr.mxu0 0.0
      %1110 = vmatpush2.msra.mxu0 0.0
      %1111 = vmatprep.subr.mxu0 0.0
      %1112 = vmatpush2.msra.mxu0 0.0
      %1113 = vmatprep.subr.mxu0 0.0
      %1114 = vmatpush2.msra.mxu0 0.0
      %1115 = vmatprep.subr.mxu0 0.0
      %1116 = vmatpush2.msra.mxu0 0.0
      %1117 = vmatprep.subr.mxu0 0.0
      %1118 = vmatpush2.msra.mxu0 0.0
      %1119 = vmatprep.subr.mxu0 0.0
      %1120 = vmatpush2.msra.mxu0 0.0
      %1121 = vmatprep.subr.mxu0 0.0
      %1122 = vmatpush2.msra.mxu0 0.0
      %1123 = vmatprep.subr.mxu0 0.0
      %1124 = vmatpush2.msra.mxu0 0.0
      %1125 = vmatprep.subr.mxu0 0.0
      %1126 = vmatpush2.msra.mxu0 0.0
      %1127 = vmatprep.subr.mxu0 0.0
      %1128 = vmatpush2.msra.mxu0 0.0
      %1129 = vmatprep.mubr.f32.mxu0 0.0
      %1130 = vmatmul.mubr.f32.gmra.mxu0 %v1063
      %v1131 = vpop.f32.mrf.mxu0
      %v1132 = vadd.f32 0.0, %v1131
      %v1133 = vpop.f32.mrf.mxu0
      %1134 = vdwg.mxu0
      %v1135 = vsel %vm918, %v770, 0
      %1137 = vmatprep.subr.mxu0 0.0
      %1138 = vmatpush1.msra.mxu0 0.0
      %1139 = vmatprep.subr.mxu0 0.0
      %1140 = vmatpush1.msra.mxu0 0.0
      %1141 = vmatprep.subr.mxu0 0.0
      %1142 = vmatpush1.msra.mxu0 0.0
      %1143 = vmatprep.subr.mxu0 0.0
      %1144 = vmatpush1.msra.mxu0 0.0
      %1145 = vmatprep.subr.mxu0 0.0
      %1146 = vmatpush1.msra.mxu0 0.0
      %1147 = vmatprep.subr.mxu0 0.0
      %1148 = vmatpush1.msra.mxu0 0.0
      %1149 = vmatprep.subr.mxu0 0.0
      %1150 = vmatpush1.msra.mxu0 0.0
      %1151 = vmatprep.subr.mxu0 0.0
      %1152 = vmatpush1.msra.mxu0 0.0
      %1153 = vmatprep.subr.mxu0 0.0
      %1154 = vmatpush1.msra.mxu0 0.0
      %1155 = vmatprep.subr.mxu0 0.0
      %1156 = vmatpush1.msra.mxu0 0.0
      %1157 = vmatprep.subr.mxu0 0.0
      %1158 = vmatpush1.msra.mxu0 0.0
      %1159 = vmatprep.subr.mxu0 0.0
      %1160 = vmatpush1.msra.mxu0 0.0
      %1161 = vmatprep.subr.mxu0 0.0
      %1162 = vmatpush1.msra.mxu0 0.0
      %1163 = vmatprep.subr.mxu0 0.0
      %1164 = vmatpush1.msra.mxu0 0.0
      %1165 = vmatprep.subr.mxu0 0.0
      %1166 = vmatpush1.msra.mxu0 0.0
      %1167 = vmatprep.subr.mxu0 0.0
      %1168 = vmatpush1.msra.mxu0 %v902
      %1169 = vmatprep.subr.mxu0 0.0
      %1170 = vmatpush2.msra.mxu0 0.0
      %1171 = vmatprep.subr.mxu0 0.0
      %1172 = vmatpush2.msra.mxu0 0.0
      %1173 = vmatprep.subr.mxu0 0.0
      %1174 = vmatpush2.msra.mxu0 0.0
      %1175 = vmatprep.subr.mxu0 0.0
      %1176 = vmatpush2.msra.mxu0 0.0
      %1177 = vmatprep.subr.mxu0 0.0
      %1178 = vmatpush2.msra.mxu0 0.0
      %1179 = vmatprep.subr.mxu0 0.0
      %1180 = vmatpush2.msra.mxu0 0.0
      %1181 = vmatprep.subr.mxu0 0.0
      %1182 = vmatpush2.msra.mxu0 0.0
      %1183 = vmatprep.subr.mxu0 0.0
      %1184 = vmatpush2.msra.mxu0 0.0
      %1185 = vmatprep.subr.mxu0 0.0
      %1186 = vmatpush2.msra.mxu0 0.0
      %1187 = vmatprep.subr.mxu0 0.0
      %1188 = vmatpush2.msra.mxu0 0.0
      %1189 = vmatprep.subr.mxu0 0.0
      %1190 = vmatpush2.msra.mxu0 0.0
      %1191 = vmatprep.subr.mxu0 0.0
      %1192 = vmatpush2.msra.mxu0 0.0
      %1193 = vmatprep.subr.mxu0 0.0
      %1194 = vmatpush2.msra.mxu0 0.0
      %1195 = vmatprep.subr.mxu0 0.0
      %1196 = vmatpush2.msra.mxu0 0.0
      %1197 = vmatprep.subr.mxu0 0.0
      %1198 = vmatpush2.msra.mxu0 0.0
      %1199 = vmatprep.subr.mxu0 0.0
      %1200 = vmatpush2.msra.mxu0 0.0
      %1201 = vmatprep.mubr.f32.mxu0 0.0
      %1202 = vmatmul.mubr.f32.gmra.mxu0 %v1135
      %v1203 = vpop.f32.mrf.mxu0
      %v1204 = vadd.f32 0.0, %v1203
      %v1205 = vpop.f32.mrf.mxu0
      %1206 = vdwg.mxu0
      %v1207 = vsel %vm918, %v988, -inf
      %1208 = vmax.xlane.f32.xlu0 %v1207
      %v1209 = vpop.xlane.xlu0 %1208
      %v1210 = vsel %vm918, %v1060, -inf
      %1211 = vmax.xlane.f32.xlu0 %v1210
      %v1212 = vpop.xlane.xlu0 %1211
      %v1213 = vsel %vm918, %v1132, -inf
      %1214 = vmax.xlane.f32.xlu0 %v1213
      %v1215 = vpop.xlane.xlu0 %1214
      %v1216 = vsel %vm918, %v1204, -inf
      %1217 = vmax.xlane.f32.xlu0 %v1216
      %v1218 = vpop.xlane.xlu0 %1217
      %v1219 = vsub.f32 %v988, %v1209
      %v1220 = vsub.f32 %v1060, %v1212
      %v1221 = vsub.f32 %v1132, %v1215
      %v1222 = vsub.f32 %v1204, %v1218
      %v1223 = vmul.f32 %v1219, 1.442695
      %v1224 = vpow.pop %v1223
      %v1225 = vmul.f32 %v1220, 1.442695
      %v1226 = vpow.pop %v1225
      %v1227 = vmul.f32 %v1221, 1.442695
      %v1228 = vpow.pop %v1227
      %v1229 = vmul.f32 %v1222, 1.442695
      %v1230 = vpow.pop %v1229
      %v1231 = vsel %vm918, %v1224, 0.0
      %1232 = vadd.xlane.f32.xlu0 %v1231
      %v1233 = vpop.xlane.xlu0 %1232
      %v1234 = vsel %vm918, %v1226, 0.0
      %1235 = vadd.xlane.f32.xlu0 %v1234
      %v1236 = vpop.xlane.xlu0 %1235
      %v1237 = vsel %vm918, %v1228, 0.0
      %1238 = vadd.xlane.f32.xlu0 %v1237
      %v1239 = vpop.xlane.xlu0 %1238
      %v1240 = vsel %vm918, %v1230, 0.0
      %1241 = vadd.xlane.f32.xlu0 %v1240
      %v1242 = vpop.xlane.xlu0 %1241
      %1243 = vrot.lane.b32.xlu0 %v760, 64
      %v1244 = vpop.permute.xlu0 %1243
      %v1247 = vsel %vm918, %v1224, 0
      %1249 = vmatprep.subr.mxu0 0.0
      %1250 = vmatpush1.msra.mxu0 0.0
      %1251 = vmatprep.subr.mxu0 0.0
      %1252 = vmatpush1.msra.mxu0 0.0
      %1253 = vmatprep.subr.mxu0 0.0
      %1254 = vmatpush1.msra.mxu0 0.0
      %1255 = vmatprep.subr.mxu0 0.0
      %1256 = vmatpush1.msra.mxu0 0.0
      %1257 = vmatprep.subr.mxu0 0.0
      %1258 = vmatpush1.msra.mxu0 0.0
      %1259 = vmatprep.subr.mxu0 0.0
      %1260 = vmatpush1.msra.mxu0 0.0
      %1261 = vmatprep.subr.mxu0 0.0
      %1262 = vmatpush1.msra.mxu0 0.0
      %1263 = vmatprep.subr.mxu0 0.0
      %1264 = vmatpush1.msra.mxu0 0.0
      %1265 = vmatprep.subr.mxu0 0.0
      %1266 = vmatpush1.msra.mxu0 0.0
      %1267 = vmatprep.subr.mxu0 0.0
      %1268 = vmatpush1.msra.mxu0 0.0
      %1269 = vmatprep.subr.mxu0 0.0
      %1270 = vmatpush1.msra.mxu0 0.0
      %1271 = vmatprep.subr.mxu0 0.0
      %1272 = vmatpush1.msra.mxu0 0.0
      %1273 = vmatprep.subr.mxu0 0.0
      %1274 = vmatpush1.msra.mxu0 0.0
      %1275 = vmatprep.subr.mxu0 0.0
      %1276 = vmatpush1.msra.mxu0 0.0
      %1277 = vmatprep.subr.mxu0 0.0
      %1278 = vmatpush1.msra.mxu0 0.0
      %1279 = vmatprep.subr.mxu0 0.0
      %1280 = vmatpush1.msra.mxu0 %v1244
      %1281 = vmatprep.subr.mxu0 0.0
      %1282 = vmatpush2.msra.mxu0 0.0
      %1283 = vmatprep.subr.mxu0 0.0
      %1284 = vmatpush2.msra.mxu0 0.0
      %1285 = vmatprep.subr.mxu0 0.0
      %1286 = vmatpush2.msra.mxu0 0.0
      %1287 = vmatprep.subr.mxu0 0.0
      %1288 = vmatpush2.msra.mxu0 0.0
      %1289 = vmatprep.subr.mxu0 0.0
      %1290 = vmatpush2.msra.mxu0 0.0
      %1291 = vmatprep.subr.mxu0 0.0
      %1292 = vmatpush2.msra.mxu0 0.0
      %1293 = vmatprep.subr.mxu0 0.0
      %1294 = vmatpush2.msra.mxu0 0.0
      %1295 = vmatprep.subr.mxu0 0.0
      %1296 = vmatpush2.msra.mxu0 0.0
      %1297 = vmatprep.subr.mxu0 0.0
      %1298 = vmatpush2.msra.mxu0 0.0
      %1299 = vmatprep.subr.mxu0 0.0
      %1300 = vmatpush2.msra.mxu0 0.0
      %1301 = vmatprep.subr.mxu0 0.0
      %1302 = vmatpush2.msra.mxu0 0.0
      %1303 = vmatprep.subr.mxu0 0.0
      %1304 = vmatpush2.msra.mxu0 0.0
      %1305 = vmatprep.subr.mxu0 0.0
      %1306 = vmatpush2.msra.mxu0 0.0
      %1307 = vmatprep.subr.mxu0 0.0
      %1308 = vmatpush2.msra.mxu0 0.0
      %1309 = vmatprep.subr.mxu0 0.0
      %1310 = vmatpush2.msra.mxu0 0.0
      %1311 = vmatprep.subr.mxu0 0.0
      %1312 = vmatpush2.msra.mxu0 0.0
      %1313 = vmatprep.mubr.f32.mxu0 0.0
      %1314 = vmatmul.mubr.f32.gmra.mxu0 %v1247
      %v1315 = vpop.f32.mrf.mxu0
      %v1316 = vadd.f32 0.0, %v1315
      %v1317 = vpop.f32.mrf.mxu0
      %1318 = vdwg.mxu0
      %1319 = vrot.lane.b32.xlu0 %v773, 64
      %v1320 = vpop.permute.xlu0 %1319
      %v1323 = vsel %vm918, %v1226, 0
      %1325 = vmatprep.subr.mxu0 0.0
      %1326 = vmatpush1.msra.mxu0 0.0
      %1327 = vmatprep.subr.mxu0 0.0
      %1328 = vmatpush1.msra.mxu0 0.0
      %1329 = vmatprep.subr.mxu0 0.0
      %1330 = vmatpush1.msra.mxu0 0.0
      %1331 = vmatprep.subr.mxu0 0.0
      %1332 = vmatpush1.msra.mxu0 0.0
      %1333 = vmatprep.subr.mxu0 0.0
      %1334 = vmatpush1.msra.mxu0 0.0
      %1335 = vmatprep.subr.mxu0 0.0
      %1336 = vmatpush1.msra.mxu0 0.0
      %1337 = vmatprep.subr.mxu0 0.0
      %1338 = vmatpush1.msra.mxu0 0.0
      %1339 = vmatprep.subr.mxu0 0.0
      %1340 = vmatpush1.msra.mxu0 0.0
      %1341 = vmatprep.subr.mxu0 0.0
      %1342 = vmatpush1.msra.mxu0 0.0
      %1343 = vmatprep.subr.mxu0 0.0
      %1344 = vmatpush1.msra.mxu0 0.0
      %1345 = vmatprep.subr.mxu0 0.0
      %1346 = vmatpush1.msra.mxu0 0.0
      %1347 = vmatprep.subr.mxu0 0.0
      %1348 = vmatpush1.msra.mxu0 0.0
      %1349 = vmatprep.subr.mxu0 0.0
      %1350 = vmatpush1.msra.mxu0 0.0
      %1351 = vmatprep.subr.mxu0 0.0
      %1352 = vmatpush1.msra.mxu0 0.0
      %1353 = vmatprep.subr.mxu0 0.0
      %1354 = vmatpush1.msra.mxu0 0.0
      %1355 = vmatprep.subr.mxu0 0.0
      %1356 = vmatpush1.msra.mxu0 %v1320
      %1357 = vmatprep.subr.mxu0 0.0
      %1358 = vmatpush2.msra.mxu0 0.0
      %1359 = vmatprep.subr.mxu0 0.0
      %1360 = vmatpush2.msra.mxu0 0.0
      %1361 = vmatprep.subr.mxu0 0.0
      %1362 = vmatpush2.msra.mxu0 0.0
      %1363 = vmatprep.subr.mxu0 0.0
      %1364 = vmatpush2.msra.mxu0 0.0
      %1365 = vmatprep.subr.mxu0 0.0
      %1366 = vmatpush2.msra.mxu0 0.0
      %1367 = vmatprep.subr.mxu0 0.0
      %1368 = vmatpush2.msra.mxu0 0.0
      %1369 = vmatprep.subr.mxu0 0.0
      %1370 = vmatpush2.msra.mxu0 0.0
      %1371 = vmatprep.subr.mxu0 0.0
      %1372 = vmatpush2.msra.mxu0 0.0
      %1373 = vmatprep.subr.mxu0 0.0
      %1374 = vmatpush2.msra.mxu0 0.0
      %1375 = vmatprep.subr.mxu0 0.0
      %1376 = vmatpush2.msra.mxu0 0.0
      %1377 = vmatprep.subr.mxu0 0.0
      %1378 = vmatpush2.msra.mxu0 0.0
      %1379 = vmatprep.subr.mxu0 0.0
      %1380 = vmatpush2.msra.mxu0 0.0
      %1381 = vmatprep.subr.mxu0 0.0
      %1382 = vmatpush2.msra.mxu0 0.0
      %1383 = vmatprep.subr.mxu0 0.0
      %1384 = vmatpush2.msra.mxu0 0.0
      %1385 = vmatprep.subr.mxu0 0.0
      %1386 = vmatpush2.msra.mxu0 0.0
      %1387 = vmatprep.subr.mxu0 0.0
      %1388 = vmatpush2.msra.mxu0 0.0
      %1389 = vmatprep.mubr.f32.mxu0 0.0
      %1390 = vmatmul.mubr.f32.gmra.mxu0 %v1323
      %v1391 = vpop.f32.mrf.mxu0
      %v1392 = vadd.f32 0.0, %v1391
      %v1393 = vpop.f32.mrf.mxu0
      %1394 = vdwg.mxu0
      %1395 = vrot.lane.b32.xlu0 %v775, 64
      %v1396 = vpop.permute.xlu0 %1395
      %v1399 = vsel %vm918, %v1228, 0
      %1401 = vmatprep.subr.mxu0 0.0
      %1402 = vmatpush1.msra.mxu0 0.0
      %1403 = vmatprep.subr.mxu0 0.0
      %1404 = vmatpush1.msra.mxu0 0.0
      %1405 = vmatprep.subr.mxu0 0.0
      %1406 = vmatpush1.msra.mxu0 0.0
      %1407 = vmatprep.subr.mxu0 0.0
      %1408 = vmatpush1.msra.mxu0 0.0
      %1409 = vmatprep.subr.mxu0 0.0
      %1410 = vmatpush1.msra.mxu0 0.0
      %1411 = vmatprep.subr.mxu0 0.0
      %1412 = vmatpush1.msra.mxu0 0.0
      %1413 = vmatprep.subr.mxu0 0.0
      %1414 = vmatpush1.msra.mxu0 0.0
      %1415 = vmatprep.subr.mxu0 0.0
      %1416 = vmatpush1.msra.mxu0 0.0
      %1417 = vmatprep.subr.mxu0 0.0
      %1418 = vmatpush1.msra.mxu0 0.0
      %1419 = vmatprep.subr.mxu0 0.0
      %1420 = vmatpush1.msra.mxu0 0.0
      %1421 = vmatprep.subr.mxu0 0.0
      %1422 = vmatpush1.msra.mxu0 0.0
      %1423 = vmatprep.subr.mxu0 0.0
      %1424 = vmatpush1.msra.mxu0 0.0
      %1425 = vmatprep.subr.mxu0 0.0
      %1426 = vmatpush1.msra.mxu0 0.0
      %1427 = vmatprep.subr.mxu0 0.0
      %1428 = vmatpush1.msra.mxu0 0.0
      %1429 = vmatprep.subr.mxu0 0.0
      %1430 = vmatpush1.msra.mxu0 0.0
      %1431 = vmatprep.subr.mxu0 0.0
      %1432 = vmatpush1.msra.mxu0 %v1396
      %1433 = vmatprep.subr.mxu0 0.0
      %1434 = vmatpush2.msra.mxu0 0.0
      %1435 = vmatprep.subr.mxu0 0.0
      %1436 = vmatpush2.msra.mxu0 0.0
      %1437 = vmatprep.subr.mxu0 0.0
      %1438 = vmatpush2.msra.mxu0 0.0
      %1439 = vmatprep.subr.mxu0 0.0
      %1440 = vmatpush2.msra.mxu0 0.0
      %1441 = vmatprep.subr.mxu0 0.0
      %1442 = vmatpush2.msra.mxu0 0.0
      %1443 = vmatprep.subr.mxu0 0.0
      %1444 = vmatpush2.msra.mxu0 0.0
      %1445 = vmatprep.subr.mxu0 0.0
      %1446 = vmatpush2.msra.mxu0 0.0
      %1447 = vmatprep.subr.mxu0 0.0
      %1448 = vmatpush2.msra.mxu0 0.0
      %1449 = vmatprep.subr.mxu0 0.0
      %1450 = vmatpush2.msra.mxu0 0.0
      %1451 = vmatprep.subr.mxu0 0.0
      %1452 = vmatpush2.msra.mxu0 0.0
      %1453 = vmatprep.subr.mxu0 0.0
      %1454 = vmatpush2.msra.mxu0 0.0
      %1455 = vmatprep.subr.mxu0 0.0
      %1456 = vmatpush2.msra.mxu0 0.0
      %1457 = vmatprep.subr.mxu0 0.0
      %1458 = vmatpush2.msra.mxu0 0.0
      %1459 = vmatprep.subr.mxu0 0.0
      %1460 = vmatpush2.msra.mxu0 0.0
      %1461 = vmatprep.subr.mxu0 0.0
      %1462 = vmatpush2.msra.mxu0 0.0
      %1463 = vmatprep.subr.mxu0 0.0
      %1464 = vmatpush2.msra.mxu0 0.0
      %1465 = vmatprep.mubr.f32.mxu0 0.0
      %1466 = vmatmul.mubr.f32.gmra.mxu0 %v1399
      %v1467 = vpop.f32.mrf.mxu0
      %v1468 = vadd.f32 0.0, %v1467
      %v1469 = vpop.f32.mrf.mxu0
      %1470 = vdwg.mxu0
      %1471 = vrot.lane.b32.xlu0 %v777, 64
      %v1472 = vpop.permute.xlu0 %1471
      %v1475 = vsel %vm918, %v1230, 0
      %1477 = vmatprep.subr.mxu0 0.0
      %1478 = vmatpush1.msra.mxu0 0.0
      %1479 = vmatprep.subr.mxu0 0.0
      %1480 = vmatpush1.msra.mxu0 0.0
      %1481 = vmatprep.subr.mxu0 0.0
      %1482 = vmatpush1.msra.mxu0 0.0
      %1483 = vmatprep.subr.mxu0 0.0
      %1484 = vmatpush1.msra.mxu0 0.0
      %1485 = vmatprep.subr.mxu0 0.0
      %1486 = vmatpush1.msra.mxu0 0.0
      %1487 = vmatprep.subr.mxu0 0.0
      %1488 = vmatpush1.msra.mxu0 0.0
      %1489 = vmatprep.subr.mxu0 0.0
      %1490 = vmatpush1.msra.mxu0 0.0
      %1491 = vmatprep.subr.mxu0 0.0
      %1492 = vmatpush1.msra.mxu0 0.0
      %1493 = vmatprep.subr.mxu0 0.0
      %1494 = vmatpush1.msra.mxu0 0.0
      %1495 = vmatprep.subr.mxu0 0.0
      %1496 = vmatpush1.msra.mxu0 0.0
      %1497 = vmatprep.subr.mxu0 0.0
      %1498 = vmatpush1.msra.mxu0 0.0
      %1499 = vmatprep.subr.mxu0 0.0
      %1500 = vmatpush1.msra.mxu0 0.0
      %1501 = vmatprep.subr.mxu0 0.0
      %1502 = vmatpush1.msra.mxu0 0.0
      %1503 = vmatprep.subr.mxu0 0.0
      %1504 = vmatpush1.msra.mxu0 0.0
      %1505 = vmatprep.subr.mxu0 0.0
      %1506 = vmatpush1.msra.mxu0 0.0
      %1507 = vmatprep.subr.mxu0 0.0
      %1508 = vmatpush1.msra.mxu0 %v1472
      %1509 = vmatprep.subr.mxu0 0.0
      %1510 = vmatpush2.msra.mxu0 0.0
      %1511 = vmatprep.subr.mxu0 0.0
      %1512 = vmatpush2.msra.mxu0 0.0
      %1513 = vmatprep.subr.mxu0 0.0
      %1514 = vmatpush2.msra.mxu0 0.0
      %1515 = vmatprep.subr.mxu0 0.0
      %1516 = vmatpush2.msra.mxu0 0.0
      %1517 = vmatprep.subr.mxu0 0.0
      %1518 = vmatpush2.msra.mxu0 0.0
      %1519 = vmatprep.subr.mxu0 0.0
      %1520 = vmatpush2.msra.mxu0 0.0
      %1521 = vmatprep.subr.mxu0 0.0
      %1522 = vmatpush2.msra.mxu0 0.0
      %1523 = vmatprep.subr.mxu0 0.0
      %1524 = vmatpush2.msra.mxu0 0.0
      %1525 = vmatprep.subr.mxu0 0.0
      %1526 = vmatpush2.msra.mxu0 0.0
      %1527 = vmatprep.subr.mxu0 0.0
      %1528 = vmatpush2.msra.mxu0 0.0
      %1529 = vmatprep.subr.mxu0 0.0
      %1530 = vmatpush2.msra.mxu0 0.0
      %1531 = vmatprep.subr.mxu0 0.0
      %1532 = vmatpush2.msra.mxu0 0.0
      %1533 = vmatprep.subr.mxu0 0.0
      %1534 = vmatpush2.msra.mxu0 0.0
      %1535 = vmatprep.subr.mxu0 0.0
      %1536 = vmatpush2.msra.mxu0 0.0
      %1537 = vmatprep.subr.mxu0 0.0
      %1538 = vmatpush2.msra.mxu0 0.0
      %1539 = vmatprep.subr.mxu0 0.0
      %1540 = vmatpush2.msra.mxu0 0.0
      %1541 = vmatprep.mubr.f32.mxu0 0.0
      %1542 = vmatmul.mubr.f32.gmra.mxu0 %v1475
      %v1543 = vpop.f32.mrf.mxu0
      %v1544 = vadd.f32 0.0, %v1543
      %v1545 = vpop.f32.mrf.mxu0
      %1546 = vdwg.mxu0
      %v1547 = vrcp.pop %v1233
      %v1548 = vmul.f32 1.0, %v1547
      %v1549 = vrcp.pop %v1236
      %v1550 = vmul.f32 1.0, %v1549
      %v1551 = vrcp.pop %v1239
      %v1552 = vmul.f32 1.0, %v1551
      %v1553 = vrcp.pop %v1242
      %v1554 = vmul.f32 1.0, %v1553
      %v1555 = vmul.f32 %v1316, %v1548
      %v1556 = vmul.f32 %v1392, %v1550
      %v1557 = vmul.f32 %v1468, %v1552
      %v1558 = vmul.f32 %v1544, %v1554
      %v1559 = vcombine.low %v1555, %v1557
      %v1560 = vcombine.high %v1555, %v1557
      %v1562 = vunpack.c.l.s4 1983009808
      %v1563 = vunpack.c.0.s8 %v1562
      %v1564 = vlaneseq
      %v1565 = vshrl.u32 %v1564, 7
      %v1566 = vsub.s32 %v1563, %v1565
      %v1567 = vrot.slane %v1559, %v1566
      %v1569 = vunpack.c.l.s4 1983009808
      %v1570 = vunpack.c.0.s8 %v1569
      %v1571 = vlaneseq
      %v1572 = vshrl.u32 %v1571, 7
      %v1573 = vsub.s32 %v1570, %v1572
      %v1574 = vrot.slane %v1560, %v1573
      %v1575 = vcombine.low %v1556, %v1558
      %v1576 = vcombine.high %v1556, %v1558
      %v1578 = vunpack.c.l.s4 1983009808
      %v1579 = vunpack.c.0.s8 %v1578
      %v1580 = vlaneseq
      %v1581 = vshrl.u32 %v1580, 7
      %v1582 = vsub.s32 %v1579, %v1581
      %v1583 = vrot.slane %v1575, %v1582
      %v1585 = vunpack.c.l.s4 1983009808
      %v1586 = vunpack.c.0.s8 %v1585
      %v1587 = vlaneseq
      %v1588 = vshrl.u32 %v1587, 7
      %v1589 = vsub.s32 %v1586, %v1588
      %v1590 = vrot.slane %v1576, %v1589
      %v1591 = vcombine.low %v1567, %v1583
      %v1592 = vcombine.high %v1567, %v1583
      %v1594 = vunpack.c.l.s4 1934713408
      %v1595 = vunpack.c.0.s8 %v1594
      %v1596 = vlaneseq
      %v1597 = vshrl.u32 %v1596, 7
      %v1598 = vsub.s32 %v1595, %v1597
      %v1599 = vrot.slane %v1591, %v1598
      %v1601 = vunpack.c.l.s4 1934713408
      %v1602 = vunpack.c.0.s8 %v1601
      %v1603 = vlaneseq
      %v1604 = vshrl.u32 %v1603, 7
      %v1605 = vsub.s32 %v1602, %v1604
      %v1606 = vrot.slane %v1592, %v1605
      %v1607 = vcombine.low %v1574, %v1590
      %v1608 = vcombine.high %v1574, %v1590
      %v1610 = vunpack.c.l.s4 1934713408
      %v1611 = vunpack.c.0.s8 %v1610
      %v1612 = vlaneseq
      %v1613 = vshrl.u32 %v1612, 7
      %v1614 = vsub.s32 %v1611, %v1613
      %v1615 = vrot.slane %v1607, %v1614
      %v1617 = vunpack.c.l.s4 1934713408
      %v1618 = vunpack.c.0.s8 %v1617
      %v1619 = vlaneseq
      %v1620 = vshrl.u32 %v1619, 7
      %v1621 = vsub.s32 %v1618, %v1620
      %v1622 = vrot.slane %v1608, %v1621
      %v1623 = vcombine.high %v1599, 0.0
      %v1624 = vcombine.high %v1606, 0.0
      %v1625 = vcombine.high %v1615, 0.0
      %v1626 = vcombine.high %v1622, 0.0
      %v1627 = vcombine.low %v1599, %v1606
      %v1629 = vunpack.c.l.s4 1983009808
      %v1630 = vunpack.c.0.s8 %v1629
      %v1631 = vlaneseq
      %v1632 = vshrl.u32 %v1631, 7
      %v1633 = vsub.s32 %v1630, %v1632
      %v1634 = vrot.slane %v1627, %v1633
      %v1635 = vcombine.low %v1623, %v1624
      %v1637 = vunpack.c.l.s4 1983009808
      %v1638 = vunpack.c.0.s8 %v1637
      %v1639 = vlaneseq
      %v1640 = vshrl.u32 %v1639, 7
      %v1641 = vsub.s32 %v1638, %v1640
      %v1642 = vrot.slane %v1635, %v1641
      %v1643 = vcombine.low %v1615, %v1622
      %v1645 = vunpack.c.l.s4 1983009808
      %v1646 = vunpack.c.0.s8 %v1645
      %v1647 = vlaneseq
      %v1648 = vshrl.u32 %v1647, 7
      %v1649 = vsub.s32 %v1646, %v1648
      %v1650 = vrot.slane %v1643, %v1649
      %v1651 = vcombine.low %v1625, %v1626
      %v1653 = vunpack.c.l.s4 1983009808
      %v1654 = vunpack.c.0.s8 %v1653
      %v1655 = vlaneseq
      %v1656 = vshrl.u32 %v1655, 7
      %v1657 = vsub.s32 %v1654, %v1656
      %v1658 = vrot.slane %v1651, %v1657
      %v1659 = vcombine.low %v1634, %v1642
      %v1660 = vcombine.high %v1634, %v1642
      %v1662 = vunpack.c.l.s4 1934713408
      %v1663 = vunpack.c.0.s8 %v1662
      %v1664 = vlaneseq
      %v1665 = vshrl.u32 %v1664, 7
      %v1666 = vsub.s32 %v1663, %v1665
      %v1667 = vrot.slane %v1659, %v1666
      %v1669 = vunpack.c.l.s4 1934713408
      %v1670 = vunpack.c.0.s8 %v1669
      %v1671 = vlaneseq
      %v1672 = vshrl.u32 %v1671, 7
      %v1673 = vsub.s32 %v1670, %v1672
      %v1674 = vrot.slane %v1660, %v1673
      %v1675 = vcombine.low %v1650, %v1658
      %v1676 = vcombine.high %v1650, %v1658
      %v1678 = vunpack.c.l.s4 1934713408
      %v1679 = vunpack.c.0.s8 %v1678
      %v1680 = vlaneseq
      %v1681 = vshrl.u32 %v1680, 7
      %v1682 = vsub.s32 %v1679, %v1681
      %v1683 = vrot.slane %v1675, %v1682
      %v1685 = vunpack.c.l.s4 1934713408
      %v1686 = vunpack.c.0.s8 %v1685
      %v1687 = vlaneseq
      %v1688 = vshrl.u32 %v1687, 7
      %v1689 = vsub.s32 %v1686, %v1688
      %v1690 = vrot.slane %v1676, %v1689
      %v1691 = vcombine.low %v1667, %v1683
      %v1692 = vcombine.high %v1667, %v1683
      %v1693 = vcombine.low %v1674, %v1690
      %v1694 = vcombine.high %v1674, %v1690
      %1696 = vrot.lane.b32.xlu0 %v1692, 8
      %v1697 = vpop.permute.xlu0 %1696
      %1700 = vrot.lane.b32.xlu0 %v1693, 16
      %v1701 = vpop.permute.xlu0 %1700
      %1704 = vrot.lane.b32.xlu0 %v1694, 24
      %v1705 = vpop.permute.xlu0 %1704
      %v1707 = vsel %vm918, %v1691, %v1697
      %vm1708 = vcmask 130048
      %v1709 = vsel %vm1708, %v1707, %v1701
      %vm1710 = vcmask 195584
      %v1711 = vsel %vm1710, %v1709, %v1705
      %v1712 = vld [vmem:[%s610] sm:$0xff]
      %v1713 = vld [vmem:[%s610 + $0x8] sm:$0xff]
      %v1714 = vld [vmem:[%s610 + $0x10] sm:$0xff]
      %v1715 = vld [vmem:[%s610 + $0x18] sm:$0xff]
      %v1716 = vld [vmem:[%s613] sm:$0x1]
      %v1718 = vlaneseq
      %v1719 = vshrl.u32 %v1718, 7
      %v1720 = vsub.s32 0, %v1719
      %v1721 = vrot.slane %v1716, %v1720
      %v1724 = vsel %vm650, %v1711, 0
      %1726 = vmatprep.subr.mxu0 0.0
      %1727 = vmatpush1.msra.mxu0 0.0
      %1728 = vmatprep.subr.mxu0 0.0
      %1729 = vmatpush1.msra.mxu0 0.0
      %1730 = vmatprep.subr.mxu0 0.0
      %1731 = vmatpush1.msra.mxu0 0.0
      %1732 = vmatprep.subr.mxu0 0.0
      %1733 = vmatpush1.msra.mxu0 0.0
      %1734 = vmatprep.subr.mxu0 0.0
      %1735 = vmatpush1.msra.mxu0 0.0
      %1736 = vmatprep.subr.mxu0 0.0
      %1737 = vmatpush1.msra.mxu0 0.0
      %1738 = vmatprep.subr.mxu0 0.0
      %1739 = vmatpush1.msra.mxu0 0.0
      %1740 = vmatprep.subr.mxu0 0.0
      %1741 = vmatpush1.msra.mxu0 0.0
      %1742 = vmatprep.subr.mxu0 0.0
      %1743 = vmatpush1.msra.mxu0 0.0
      %1744 = vmatprep.subr.mxu0 0.0
      %1745 = vmatpush1.msra.mxu0 0.0
      %1746 = vmatprep.subr.mxu0 0.0
      %1747 = vmatpush1.msra.mxu0 0.0
      %1748 = vmatprep.subr.mxu0 0.0
      %1749 = vmatpush1.msra.mxu0 0.0
      %1750 = vmatprep.subr.mxu0 0.0
      %1751 = vmatpush1.msra.mxu0 %v1715
      %1752 = vmatprep.subr.mxu0 0.0
      %1753 = vmatpush1.msra.mxu0 %v1714
      %1754 = vmatprep.subr.mxu0 0.0
      %1755 = vmatpush1.msra.mxu0 %v1713
      %1756 = vmatprep.subr.mxu0 0.0
      %1757 = vmatpush1.msra.mxu0 %v1712
      %1758 = vmatprep.subr.mxu0 0.0
      %1759 = vmatpush2.msra.mxu0 0.0
      %1760 = vmatprep.subr.mxu0 0.0
      %1761 = vmatpush2.msra.mxu0 0.0
      %1762 = vmatprep.subr.mxu0 0.0
      %1763 = vmatpush2.msra.mxu0 0.0
      %1764 = vmatprep.subr.mxu0 0.0
      %1765 = vmatpush2.msra.mxu0 0.0
      %1766 = vmatprep.subr.mxu0 0.0
      %1767 = vmatpush2.msra.mxu0 0.0
      %1768 = vmatprep.subr.mxu0 0.0
      %1769 = vmatpush2.msra.mxu0 0.0
      %1770 = vmatprep.subr.mxu0 0.0
      %1771 = vmatpush2.msra.mxu0 0.0
      %1772 = vmatprep.subr.mxu0 0.0
      %1773 = vmatpush2.msra.mxu0 0.0
      %1774 = vmatprep.subr.mxu0 0.0
      %1775 = vmatpush2.msra.mxu0 0.0
      %1776 = vmatprep.subr.mxu0 0.0
      %1777 = vmatpush2.msra.mxu0 0.0
      %1778 = vmatprep.subr.mxu0 0.0
      %1779 = vmatpush2.msra.mxu0 0.0
      %1780 = vmatprep.subr.mxu0 0.0
      %1781 = vmatpush2.msra.mxu0 0.0
      %1782 = vmatprep.subr.mxu0 0.0
      %1783 = vmatpush2.msra.mxu0 0.0
      %1784 = vmatprep.subr.mxu0 0.0
      %1785 = vmatpush2.msra.mxu0 0.0
      %1786 = vmatprep.subr.mxu0 0.0
      %1787 = vmatpush2.msra.mxu0 0.0
      %1788 = vmatprep.subr.mxu0 0.0
      %1789 = vmatpush2.msra.mxu0 0.0
      %1790 = vmatprep.mubr.f32.mxu0 0.0
      %1791 = vmatmul.mubr.f32.gmra.mxu0 %v1724
      %v1792 = vpop.f32.mrf.mxu0
      %v1793 = vadd.f32 %v1721, %v1792
      %v1794 = vpop.f32.mrf.mxu0
      %1795 = vdwg.mxu0
      %v1796 = vadd.f32 %v647, %v1793
      %v1797 = vld [vmem:[%s616] sm:$0x1]
      %v1798 = vld [vmem:[%s619] sm:$0x1]
      %v1799 = vsel %vm650, %v1796, 0.0
      %1800 = vadd.xlane.f32.xlu0 %v1799
      %v1801 = vpop.xlane.xlu0 %1800
      %v1802 = vmul.f32 %v1801, %v654
      %v1803 = vsub.f32 %v1796, %v1802
      %v1804 = vmul.f32 %v1803, %v1803
      %v1805 = vsel %vm650, %v1804, 0.0
      %1806 = vadd.xlane.f32.xlu0 %v1805
      %v1807 = vpop.xlane.xlu0 %1806
      %v1808 = vmul.f32 %v1807, %v654
      %v1809 = vadd.f32 %v1808, 1e-05
      %v1810 = vrsqrt.pop %v1809
      %v1811 = vmul.f32 %v1803, %v1810
      %v1813 = vlaneseq
      %v1814 = vshrl.u32 %v1813, 7
      %v1815 = vsub.s32 0, %v1814
      %v1816 = vrot.slane %v1797, %v1815
      %v1818 = vmul.f32 %v1811, %v1816
      %v1820 = vlaneseq
      %v1821 = vshrl.u32 %v1820, 7
      %v1822 = vsub.s32 0, %v1821
      %v1823 = vrot.slane %v1798, %v1822
      %v1825 = vadd.f32 %v1818, %v1823
      %v1826 = vld [vmem:[%s624] sm:$0xff]
      %v1827 = vld [vmem:[%s624 + $0x8] sm:$0xff]
      %v1828 = vld [vmem:[%s624 + $0x10] sm:$0xff]
      %v1829 = vld [vmem:[%s624 + $0x18] sm:$0xff]
      %v1830 = vld [vmem:[%s627] sm:$0x1]
      %v1832 = vlaneseq
      %v1833 = vshrl.u32 %v1832, 7
      %v1834 = vsub.s32 0, %v1833
      %v1835 = vrot.slane %v1830, %v1834
      %v1838 = vsel %vm650, %v1825, 0
      %1840 = vmatprep.subr.mxu0 0.0
      %1841 = vmatpush1.msra.mxu0 0.0
      %1842 = vmatprep.subr.mxu0 0.0
      %1843 = vmatpush1.msra.mxu0 0.0
      %1844 = vmatprep.subr.mxu0 0.0
      %1845 = vmatpush1.msra.mxu0 0.0
      %1846 = vmatprep.subr.mxu0 0.0
      %1847 = vmatpush1.msra.mxu0 0.0
      %1848 = vmatprep.subr.mxu0 0.0
      %1849 = vmatpush1.msra.mxu0 0.0
      %1850 = vmatprep.subr.mxu0 0.0
      %1851 = vmatpush1.msra.mxu0 0.0
      %1852 = vmatprep.subr.mxu0 0.0
      %1853 = vmatpush1.msra.mxu0 0.0
      %1854 = vmatprep.subr.mxu0 0.0
      %1855 = vmatpush1.msra.mxu0 0.0
      %1856 = vmatprep.subr.mxu0 0.0
      %1857 = vmatpush1.msra.mxu0 0.0
      %1858 = vmatprep.subr.mxu0 0.0
      %1859 = vmatpush1.msra.mxu0 0.0
      %1860 = vmatprep.subr.mxu0 0.0
      %1861 = vmatpush1.msra.mxu0 0.0
      %1862 = vmatprep.subr.mxu0 0.0
      %1863 = vmatpush1.msra.mxu0 0.0
      %1864 = vmatprep.subr.mxu0 0.0
      %1865 = vmatpush1.msra.mxu0 %v1829
      %1866 = vmatprep.subr.mxu0 0.0
      %1867 = vmatpush1.msra.mxu0 %v1828
      %1868 = vmatprep.subr.mxu0 0.0
      %1869 = vmatpush1.msra.mxu0 %v1827
      %1870 = vmatprep.subr.mxu0 0.0
      %1871 = vmatpush1.msra.mxu0 %v1826
      %1872 = vmatprep.subr.mxu0 0.0
      %1873 = vmatpush2.msra.mxu0 0.0
      %1874 = vmatprep.subr.mxu0 0.0
      %1875 = vmatpush2.msra.mxu0 0.0
      %1876 = vmatprep.subr.mxu0 0.0
      %1877 = vmatpush2.msra.mxu0 0.0
      %1878 = vmatprep.subr.mxu0 0.0
      %1879 = vmatpush2.msra.mxu0 0.0
      %1880 = vmatprep.subr.mxu0 0.0
      %1881 = vmatpush2.msra.mxu0 0.0
      %1882 = vmatprep.subr.mxu0 0.0
      %1883 = vmatpush2.msra.mxu0 0.0
      %1884 = vmatprep.subr.mxu0 0.0
      %1885 = vmatpush2.msra.mxu0 0.0
      %1886 = vmatprep.subr.mxu0 0.0
      %1887 = vmatpush2.msra.mxu0 0.0
      %1888 = vmatprep.subr.mxu0 0.0
      %1889 = vmatpush2.msra.mxu0 0.0
      %1890 = vmatprep.subr.mxu0 0.0
      %1891 = vmatpush2.msra.mxu0 0.0
      %1892 = vmatprep.subr.mxu0 0.0
      %1893 = vmatpush2.msra.mxu0 0.0
      %1894 = vmatprep.subr.mxu0 0.0
      %1895 = vmatpush2.msra.mxu0 0.0
      %1896 = vmatprep.subr.mxu0 0.0
      %1897 = vmatpush2.msra.mxu0 0.0
      %1898 = vmatprep.subr.mxu0 0.0
      %1899 = vmatpush2.msra.mxu0 0.0
      %1900 = vmatprep.subr.mxu0 0.0
      %1901 = vmatpush2.msra.mxu0 0.0
      %1902 = vmatprep.subr.mxu0 0.0
      %1903 = vmatpush2.msra.mxu0 0.0
      %1904 = vmatprep.mubr.f32.mxu0 0.0
      %1905 = vmatmul.mubr.f32.gmra.mxu0 %v1838
      %v1906 = vpop.f32.mrf.mxu0
      %v1907 = vadd.f32 %v1835, %v1906
      %v1908 = vpop.f32.mrf.mxu0
      %1909 = vdwg.mxu0
      %v1910 = vmul.f32 %v1907, 1.702
      %v1911 = vxor.u32 %v1910, 2147483648
      %v1912 = vmul.f32 %v1911, 1.442695
      %v1913 = vpow.pop %v1912
      %v1914 = vadd.f32 %v1913, 1.0
      %v1915 = vrcp.pop %v1914
      %v1916 = vmul.f32 1.0, %v1915
      %v1917 = vmul.f32 %v1907, %v1916
      %v1918 = vld [vmem:[%s632] sm:$0xff]
      %v1919 = vld [vmem:[%s632 + $0x8] sm:$0xff]
      %v1920 = vld [vmem:[%s632 + $0x10] sm:$0xff]
      %v1921 = vld [vmem:[%s632 + $0x18] sm:$0xff]
      %v1922 = vld [vmem:[%s632 + $0x20] sm:$0xff]
      %v1923 = vld [vmem:[%s632 + $0x28] sm:$0xff]
      %v1924 = vld [vmem:[%s632 + $0x30] sm:$0xff]
      %v1925 = vld [vmem:[%s632 + $0x38] sm:$0xff]
      %v1926 = vld [vmem:[%s632 + $0x40] sm:$0xff]
      %v1927 = vld [vmem:[%s632 + $0x48] sm:$0xff]
      %v1928 = vld [vmem:[%s632 + $0x50] sm:$0xff]
      %v1929 = vld [vmem:[%s632 + $0x58] sm:$0xff]
      %v1930 = vld [vmem:[%s632 + $0x60] sm:$0xff]
      %v1931 = vld [vmem:[%s632 + $0x68] sm:$0xff]
      %v1932 = vld [vmem:[%s632 + $0x70] sm:$0xff]
      %v1933 = vld [vmem:[%s632 + $0x78] sm:$0xff]
      %v1934 = vld [vmem:[%s635] sm:$0x1]
      %v1936 = vlaneseq
      %v1937 = vshrl.u32 %v1936, 7
      %v1938 = vsub.s32 0, %v1937
      %v1939 = vrot.slane %v1934, %v1938
      %1941 = vmatprep.subr.mxu0 0.0
      %1942 = vmatpush1.msra.mxu0 %v1933
      %1943 = vmatprep.subr.mxu0 0.0
      %1944 = vmatpush1.msra.mxu0 %v1932
      %1945 = vmatprep.subr.mxu0 0.0
      %1946 = vmatpush1.msra.mxu0 %v1931
      %1947 = vmatprep.subr.mxu0 0.0
      %1948 = vmatpush1.msra.mxu0 %v1930
      %1949 = vmatprep.subr.mxu0 0.0
      %1950 = vmatpush1.msra.mxu0 %v1929
      %1951 = vmatprep.subr.mxu0 0.0
      %1952 = vmatpush1.msra.mxu0 %v1928
      %1953 = vmatprep.subr.mxu0 0.0
      %1954 = vmatpush1.msra.mxu0 %v1927
      %1955 = vmatprep.subr.mxu0 0.0
      %1956 = vmatpush1.msra.mxu0 %v1926
      %1957 = vmatprep.subr.mxu0 0.0
      %1958 = vmatpush1.msra.mxu0 %v1925
      %1959 = vmatprep.subr.mxu0 0.0
      %1960 = vmatpush1.msra.mxu0 %v1924
      %1961 = vmatprep.subr.mxu0 0.0
      %1962 = vmatpush1.msra.mxu0 %v1923
      %1963 = vmatprep.subr.mxu0 0.0
      %1964 = vmatpush1.msra.mxu0 %v1922
      %1965 = vmatprep.subr.mxu0 0.0
      %1966 = vmatpush1.msra.mxu0 %v1921
      %1967 = vmatprep.subr.mxu0 0.0
      %1968 = vmatpush1.msra.mxu0 %v1920
      %1969 = vmatprep.subr.mxu0 0.0
      %1970 = vmatpush1.msra.mxu0 %v1919
      %1971 = vmatprep.subr.mxu0 0.0
      %1972 = vmatpush1.msra.mxu0 %v1918
      %1973 = vmatprep.subr.mxu0 0.0
      %1974 = vmatpush2.msra.mxu0 0.0
      %1975 = vmatprep.subr.mxu0 0.0
      %1976 = vmatpush2.msra.mxu0 0.0
      %1977 = vmatprep.subr.mxu0 0.0
      %1978 = vmatpush2.msra.mxu0 0.0
      %1979 = vmatprep.subr.mxu0 0.0
      %1980 = vmatpush2.msra.mxu0 0.0
      %1981 = vmatprep.subr.mxu0 0.0
      %1982 = vmatpush2.msra.mxu0 0.0
      %1983 = vmatprep.subr.mxu0 0.0
      %1984 = vmatpush2.msra.mxu0 0.0
      %1985 = vmatprep.subr.mxu0 0.0
      %1986 = vmatpush2.msra.mxu0 0.0
      %1987 = vmatprep.subr.mxu0 0.0
      %1988 = vmatpush2.msra.mxu0 0.0
      %1989 = vmatprep.subr.mxu0 0.0
      %1990 = vmatpush2.msra.mxu0 0.0
      %1991 = vmatprep.subr.mxu0 0.0
      %1992 = vmatpush2.msra.mxu0 0.0
      %1993 = vmatprep.subr.mxu0 0.0
      %1994 = vmatpush2.msra.mxu0 0.0
      %1995 = vmatprep.subr.mxu0 0.0
      %1996 = vmatpush2.msra.mxu0 0.0
      %1997 = vmatprep.subr.mxu0 0.0
      %1998 = vmatpush2.msra.mxu0 0.0
      %1999 = vmatprep.subr.mxu0 0.0
      %2000 = vmatpush2.msra.mxu0 0.0
      %2001 = vmatprep.subr.mxu0 0.0
      %2002 = vmatpush2.msra.mxu0 0.0
      %2003 = vmatprep.subr.mxu0 0.0
      %2004 = vmatpush2.msra.mxu0 0.0
      %2005 = vmatprep.mubr.f32.mxu0 0.0
      %2006 = vmatmul.mubr.f32.gmra.mxu0 %v1917
      %v2007 = vpop.f32.mrf.mxu0
      %v2008 = vadd.f32 %v1939, %v2007
      %v2009 = vpop.f32.mrf.mxu0
      %2010 = vdwg.mxu0
      %v2011 = vadd.f32 %v1796, %v2008
      %2012 = vst.msk [vmem:[%s639] sm:$0xff] %vm650, %v2011
      %p2013 = scmp.lt.s32.totalorder %s28, 1
      %s2014 = scalar_select %p2013, %s28, 1
      %s2015 = smul.addr %s2014, 8
      %s2016 = scalar_lea.vmem %s13, %s2015
      // Predicated region
      $region77: #{transformer_pallas.1} parent=71 // pred_check
        %p2017 = pneg %p392
      $region78: #{transformer_pallas.1} parent=71 // pred_check_branch
        %2019 = sbr.rel (%p2017) target = $region80
      $region79: #{transformer_pallas.1} parent=71 // pred_region
        _
      $region80: #{transformer_pallas.1} parent=71 // pred_fallthru
        _
    $region72: #{transformer_pallas.1} parent=5 // pred_fallthru
      _
    %p2020 = scmp.le.s32.totalorder 2, %s19
    // Predicated region
    $region81: #{transformer_pallas.1} parent=5 // pred_check
      %p2021 = pneg %p2020
    $region82: #{transformer_pallas.1} parent=5 // pred_check_branch
      %2023 = sbr.rel (%p2021) target = $region84
    $region83: #{transformer_pallas.1} parent=5 // pred_region
      %s2024 = ssub.s32 %s19, 2
      // Predicated region
      $region85: #{transformer_pallas.1} parent=83 // pred_check
        %p2025 = pneg %p398
      $region86: #{transformer_pallas.1} parent=83 // pred_check_branch
        %2027 = sbr.rel (%p2025) target = $region88
      $region87: #{transformer_pallas.1} parent=83 // pred_region
        %p2028 = scmp.lt.s32.totalorder %s30, 1
        %s2029 = scalar_select %p2028, %s30, 1
        %s2030 = smul.addr %s2029, 8
        %s2031 = scalar_lea.vmem %s13, %s2030
      $region88: #{transformer_pallas.1} parent=83 // pred_fallthru
        _
    $region84: #{transformer_pallas.1} parent=5 // pred_fallthru
      _
  $region6: #{transformer_pallas.1} parent=0 // loop_footer
    %s23 = sadd.s32 1, %s19
  $region7: #{transformer_pallas.1} parent=0 // loop_footer_branch
    %18 = sbr.rel target = $region3
  $region8: #{transformer_pallas.1} parent=0 // loop_exit
    _

</llo_original>
